<compile_context>
chip_gen: v7x
topology: tpu7x:2x2x1
jax: 0.10.0
libtpu: 0.0.40
codegen_flags: <defaults>
</compile_context>

<pallas_src>
import math

import jax
import jax.numpy as jnp
from jax import lax
from jax.experimental import pallas as pl
from jax.experimental.pallas import tpu as pltpu

B_J0 = 0.01   # baseline threshold b_j0
R_M = 1.0
DT = 1.0
BETA_O = 1.8  # output-layer adaptation strength (isAdapt=1); hidden beta = 0


def srnn_alif_kernel(xp_ref, w_ref, hc_ref, oc_ref, h0_ref, o0_ref, rec0_ref,
                     out_ref,
                     h_mem_r, h_spk_r, rec_r, o_mem_r, o_spk_r, b_o_r):
    c = pl.program_id(0)

    @pl.when(c == 0)
    def _init():
        # hidden_mem = hidden_spike = rand*b_j0 ; output_mem = output_spike = rand*b_j0
        h_mem_r[...] = h0_ref[...]
        h_spk_r[...] = h0_ref[...]
        rec_r[...] = rec0_ref[...]             # h_spk_init @ Wh_eff (precomputed, f32)
        o_mem_r[...] = o0_ref[...]
        o_spk_r[...] = o0_ref[...]
        b_o_r[...] = jnp.full(b_o_r.shape, B_J0, dtype=jnp.float32)

    B, H = h_mem_r.shape
    O = o_mem_r.shape[-1]
    t_c = xp_ref.shape[0]

    # Loop-invariant constants: load + broadcast ONCE (JAX does not CSE
    # broadcast_in_dim, so keep these above the unrolled loop).
    w = w_ref[...]                                          # (H, H+O) bf16, (1-alpha)-folded
    alpha_h = jnp.broadcast_to(hc_ref[...][0:1], (B, H))    # exp(-dt/tau_m_h)
    oc = oc_ref[...]                                        # (4, O)
    alpha_o = jnp.broadcast_to(oc[0:1], (B, O))             # exp(-dt/tau_m_o)
    ro_o = jnp.broadcast_to(oc[1:2], (B, O))                # exp(-dt/tau_adp_o)
    om_ro_o = jnp.broadcast_to(oc[2:3], (B, O))             # 1 - ro
    bo_s = jnp.broadcast_to(oc[3:4], (B, O))                # (1-alpha_o) * bo

    def step(s, carry):
        h_mem, h_spk, rec, o_mem, o_spk, b_o = carry

        # ---- hidden layer: mem_update_adp(..., isAdapt=0) -> threshold == b_j0.
        # xp and rec already carry the (1 - alpha_h) factor.
        h_mem = h_mem * alpha_h + xp_ref[s] + rec - B_J0 * h_spk
        h_spk = (h_mem - B_J0 > 0.0).astype(jnp.float32)

        # ---- fused recurrent + readout projection of the NEW spikes (1 MXU op)
        proj = jnp.dot(h_spk.astype(w.dtype), w,
                       preferred_element_type=jnp.float32)  # (B, H+O)
        rec = proj[:, :H]                                   # carried to the next step
        o_in = proj[:, H:] + bo_s                           # (1-alpha_o)*h2o(spike)

        # ---- output layer: mem_update_adp(..., isAdapt=1)
        b_o = ro_o * b_o + om_ro_o * o_spk
        theta = B_J0 + BETA_O * b_o
        o_mem = o_mem * alpha_o + o_in - theta * o_spk
        o_spk = (o_mem - theta > 0.0).astype(jnp.float32)

        out_ref[s] = o_mem                                  # raw membrane; softmax below
        return (h_mem, h_spk, rec, o_mem, o_spk, b_o)

    carry0 = (h_mem_r[...], h_spk_r[...], rec_r[...],
              o_mem_r[...], o_spk_r[...], b_o_r[...])
    h_mem, h_spk, rec, o_mem, o_spk, b_o = lax.fori_loop(
        0, t_c, step, carry0, unroll=True)

    # Persist recurrent state once per chunk for the next grid step.
    h_mem_r[...] = h_mem
    h_spk_r[...] = h_spk
    rec_r[...] = rec
    o_mem_r[...] = o_mem
    o_spk_r[...] = o_spk
    b_o_r[...] = b_o

    # output_sumspike = log_softmax(output_mem, dim=1), once per chunk slab.
    m = out_ref[...]                                        # (T_C, B, O)
    mx = jnp.max(m, axis=-1, keepdims=True)
    lse = mx + jnp.log(jnp.sum(jnp.exp(m - mx), axis=-1, keepdims=True))
    out_ref[...] = m - lse


def srnn_alif_forward(x, params, h0, o0, *, chunk=8):
    """x: (batch, seq, input_dim) f32 -> (batch, output_size, seq).

    h0 / o0 stand in for the torch.rand(...) * b_j0 state initialization.
    """
    B, S, I = x.shape
    H = params["wi"].shape[1]
    O = params["wo"].shape[1]
    f32 = jnp.float32

    t_c = math.gcd(S, chunk)                 # time-chunk size (divides S)
    n_chunks = S // t_c

    a_h = jnp.exp(-DT / params["tau_m_h"])   # (1, H)
    a_o = jnp.exp(-DT / params["tau_m_o"])   # (1, O)
    r_o = jnp.exp(-DT / params["tau_adp_o"]) # (1, O)

    # 1) Hoisted input projection with biases and (1 - alpha_h) folded in.
    xp = ((jnp.einsum("bsi,ih->sbh", x.astype(f32), params["wi"])
           + params["bi"] + params["bh"]) * (1.0 - a_h))         # (S, B, H)

    # 2) Fused recurrent + readout weight, (1 - alpha) column-folded, bf16
    #    MXU operand. rec0 uses the bf16-rounded weight so step 0 matches the
    #    in-kernel operand exactly.
    wh_eff = (params["wh"] * (1.0 - a_h)).astype(jnp.bfloat16).astype(f32)
    wo_eff = (params["wo"] * (1.0 - a_o)).astype(jnp.bfloat16).astype(f32)
    w_rec = jnp.concatenate([wh_eff, wo_eff], axis=1).astype(jnp.bfloat16)  # (H, H+O)
    rec0 = jnp.dot(h0, wh_eff)                                   # (B, H)

    # 3) Loop-invariant per-step decay constants.
    hconst = a_h                                                 # (1, H)
    oconst = jnp.concatenate(
        [a_o, r_o, 1.0 - r_o, (1.0 - a_o) * params["bo"]], axis=0)  # (4, O)

    full2 = lambda c: (0, 0)
    out_seq = pl.pallas_call(
        srnn_alif_kernel,
        out_shape=jax.ShapeDtypeStruct((S, B, O), f32),
        grid_spec=pltpu.PrefetchScalarGridSpec(
            num_scalar_prefetch=0,
            grid=(n_chunks,),
            in_specs=[
                pl.BlockSpec((t_c, B, H), lambda c: (c, 0, 0)),  # pre-projected inputs
                pl.BlockSpec((H, H + O), full2),                 # fused [Wh | Wo] (bf16)
                pl.BlockSpec((1, H), full2),                     # alpha_h
                pl.BlockSpec((4, O), full2),                     # output consts + scaled bo
                pl.BlockSpec((B, H), full2),                     # hidden init (mem == spike)
                pl.BlockSpec((B, O), full2),                     # output init (mem == spike)
                pl.BlockSpec((B, H), full2),                     # rec0 = h_spk_init @ Wh_eff
            ],
            out_specs=pl.BlockSpec((t_c, B, O), lambda c: (c, 0, 0)),
            scratch_shapes=[
                pltpu.VMEM((B, H), f32),   # hidden_mem
                pltpu.VMEM((B, H), f32),   # hidden_spike
                pltpu.VMEM((B, H), f32),   # rec = prev_spike @ Wh_eff
                pltpu.VMEM((B, O), f32),   # output_mem
                pltpu.VMEM((B, O), f32),   # output_spike
                pltpu.VMEM((B, O), f32),   # b_o adaptive-threshold state
            ],
        ),
        # Time is inherently sequential. For large batches on v7x, add a
        # leading "parallel" batch-block grid axis (with per-block state
        # scratch) to occupy both TensorCores.
        compiler_params=pltpu.CompilerParams(dimension_semantics=("arbitrary",)),
    )(xp, w_rec, hconst, oconst, h0, o0, rec0)

    return jnp.transpose(out_seq, (1, 2, 0))   # (batch, output_size, seq)


def make_params(key, in_size, hidden_size, output_size):
    k1, k2, k3 = jax.random.split(key, 3)

    def xavier_uniform(k, fan_in, fan_out):
        limit = math.sqrt(6.0 / (fan_in + fan_out))
        # stored already transposed: (fan_in, fan_out) so kernel does x @ W
        return jax.random.uniform(k, (fan_in, fan_out), jnp.float32, -limit, limit)

    def orthogonal(k, n):
        a = jax.random.normal(k, (n, n), jnp.float32)
        q, r = jnp.linalg.qr(a)
        q = q * jnp.sign(jnp.diag(r))[None, :]
        return q

    return {
        "wi": xavier_uniform(k1, in_size, hidden_size),
        "bi": jnp.zeros((1, hidden_size), jnp.float32),
        "wh": orthogonal(k2, hidden_size),
        "bh": jnp.zeros((1, hidden_size), jnp.float32),
        "wo": xavier_uniform(k3, hidden_size, output_size),
        "bo": jnp.zeros((1, output_size), jnp.float32),
        "tau_adp_h": jnp.full((1, hidden_size), 7.0, jnp.float32),
        "tau_m_h": jnp.full((1, hidden_size), 20.0, jnp.float32),
        "tau_adp_o": jnp.full((1, output_size), 100.0, jnp.float32),
        "tau_m_o": jnp.full((1, output_size), 20.0, jnp.float32),
    }


def srnn_alif_reference(x, params, h0, o0):
    """Pure-JAX mirror of the PyTorch forward, for validation.

    Algebraically identical to the PyTorch recurrence; the only numerical
    deviations (shared with the kernel) are:
      - Wh / Wo carry the (1 - alpha) leak factor pre-folded per column and are
        rounded to bf16 to match the MXU operand (spike vectors are exact in
        bf16; accumulation f32),
      - the hidden adaptation state b_h is omitted: isAdapt=0 => beta=0, so it
        never affects any output (exactly as in the PyTorch code).
    """
    f32 = jnp.float32
    a_h = jnp.exp(-DT / params["tau_m_h"])
    a_o = jnp.exp(-DT / params["tau_m_o"])
    r_o = jnp.exp(-DT / params["tau_adp_o"])
    wi = params["wi"]
    wh_eff = (params["wh"] * (1.0 - a_h)).astype(jnp.bfloat16).astype(f32)
    wo_eff = (params["wo"] * (1.0 - a_o)).astype(jnp.bfloat16).astype(f32)
    bo_eff = (1.0 - a_o) * params["bo"]
    B, S, _ = x.shape
    h_mem = h_spk = h0
    o_mem = o_spk = o0
    b_o = jnp.full_like(o0, B_J0)
    outs = []
    for t in range(S):
        xt = x[:, t, :].astype(f32)
        xp_t = (xt @ wi + params["bi"] + params["bh"]) * (1.0 - a_h)
        # hidden: isAdapt=0 -> beta=0 -> threshold is the constant b_j0;
        # (1 - alpha_h) * R_m distributed over the input / recurrent terms.
        h_mem = h_mem * a_h + xp_t + h_spk @ wh_eff - B_J0 * h_spk * DT
        h_spk = (h_mem - B_J0 > 0.0).astype(f32)
        # output: isAdapt=1
        o_in = h_spk @ wo_eff + bo_eff
        b_o = r_o * b_o + (1.0 - r_o) * o_spk
        theta = B_J0 + BETA_O * b_o
        o_mem = o_mem * a_o + o_in - theta * o_spk * DT
        o_spk = (o_mem - theta > 0.0).astype(f32)
        outs.append(jax.nn.log_softmax(o_mem, axis=1))
    return jnp.transpose(jnp.stack(outs), (1, 2, 0))


if __name__ == "__main__":
    batch, seq, in_size, hidden_size, output_size = 2, 16, 4, 32, 4

    key = jax.random.PRNGKey(0)
    kx, kp, kh, ko = jax.random.split(key, 4)

    x = jax.random.normal(kx, (batch, seq, in_size), jnp.float32)
    params = make_params(kp, in_size, hidden_size, output_size)
    h0 = jax.random.uniform(kh, (batch, hidden_size), jnp.float32) * B_J0
    o0 = jax.random.uniform(ko, (batch, output_size), jnp.float32) * B_J0

    out = srnn_alif_forward(x, params, h0, o0, chunk=8)
    out = jax.block_until_ready(out)

    ref = srnn_alif_reference(x, params, h0, o0)
    assert out.shape == (batch, output_size, seq)
    assert jnp.allclose(out, ref, atol=1e-4, rtol=1e-4), float(
        jnp.max(jnp.abs(out - ref)))
    print("KERNEL_OK")
</pallas_src>

<mosaic_0001>
module attributes {stable_mosaic.version = 11 : i64} {
  func.func @srnn_alif_kernel(%arg0: i32, %arg1: memref<8x2x32xf32, #tpu.memory_space<vmem>>, %arg2: memref<32x36xbf16, #tpu.memory_space<vmem>>, %arg3: memref<1x32xf32, #tpu.memory_space<vmem>>, %arg4: memref<4x4xf32, #tpu.memory_space<vmem>>, %arg5: memref<2x32xf32, #tpu.memory_space<vmem>>, %arg6: memref<2x4xf32, #tpu.memory_space<vmem>>, %arg7: memref<2x32xf32, #tpu.memory_space<vmem>>, %arg8: memref<8x2x4xf32, #tpu.memory_space<vmem>>, %arg9: memref<2x32xf32, #tpu.memory_space<vmem>>, %arg10: memref<2x32xf32, #tpu.memory_space<vmem>>, %arg11: memref<2x32xf32, #tpu.memory_space<vmem>>, %arg12: memref<2x4xf32, #tpu.memory_space<vmem>>, %arg13: memref<2x4xf32, #tpu.memory_space<vmem>>, %arg14: memref<2x4xf32, #tpu.memory_space<vmem>>) attributes {dimension_semantics = [#tpu.dimension_semantics<arbitrary>], iteration_bounds = array<i64: 2>, scalar_prefetch = 0 : i64, scratch_operands = 6 : i64, tpu.core_type = #tpu.core_type<tc>, window_params = [{transform_indices = @transform_0, window_bounds = array<i64: 8, 2, 32>}, {pipeline_mode = #tpu.pipeline_mode<synchronous>, transform_indices = @transform_1, window_bounds = array<i64: 32, 36>}, {pipeline_mode = #tpu.pipeline_mode<synchronous>, transform_indices = @transform_2, window_bounds = array<i64: 1, 32>}, {pipeline_mode = #tpu.pipeline_mode<synchronous>, transform_indices = @transform_3, window_bounds = array<i64: 4, 4>}, {pipeline_mode = #tpu.pipeline_mode<synchronous>, transform_indices = @transform_4, window_bounds = array<i64: 2, 32>}, {pipeline_mode = #tpu.pipeline_mode<synchronous>, transform_indices = @transform_5, window_bounds = array<i64: 2, 4>}, {pipeline_mode = #tpu.pipeline_mode<synchronous>, transform_indices = @transform_6, window_bounds = array<i64: 2, 32>}, {transform_indices = @transform_7, window_bounds = array<i64: 8, 2, 4>}]} {
    %c0_i32 = arith.constant 0 : i32
    %0 = arith.cmpi eq, %arg0, %c0_i32 : i32
    %1 = arith.extui %0 : i1 to i32
    %c0_i32_0 = arith.constant 0 : i32
    %2 = arith.cmpi ne, %1, %c0_i32_0 : i32
    scf.if %2 {
      %c0_126 = arith.constant 0 : index
      %c0_127 = arith.constant 0 : index
      %365 = vector.load %arg5[%c0_126, %c0_127] : memref<2x32xf32, #tpu.memory_space<vmem>>, vector<2x32xf32>
      %c0_128 = arith.constant 0 : index
      %c0_129 = arith.constant 0 : index
      %366 = vector.load %arg9[%c0_128, %c0_129] : memref<2x32xf32, #tpu.memory_space<vmem>>, vector<2x32xf32>
      tpu.vector_store %arg9[%c0_128, %c0_129], %365 {strides = array<i32>} : memref<2x32xf32, #tpu.memory_space<vmem>>, vector<2x32xf32>,
      %c0_130 = arith.constant 0 : index
      %c0_131 = arith.constant 0 : index
      %367 = vector.load %arg5[%c0_130, %c0_131] : memref<2x32xf32, #tpu.memory_space<vmem>>, vector<2x32xf32>
      %c0_132 = arith.constant 0 : index
      %c0_133 = arith.constant 0 : index
      %368 = vector.load %arg10[%c0_132, %c0_133] : memref<2x32xf32, #tpu.memory_space<vmem>>, vector<2x32xf32>
      tpu.vector_store %arg10[%c0_132, %c0_133], %367 {strides = array<i32>} : memref<2x32xf32, #tpu.memory_space<vmem>>, vector<2x32xf32>,
      %c0_134 = arith.constant 0 : index
      %c0_135 = arith.constant 0 : index
      %369 = vector.load %arg7[%c0_134, %c0_135] : memref<2x32xf32, #tpu.memory_space<vmem>>, vector<2x32xf32>
      %c0_136 = arith.constant 0 : index
      %c0_137 = arith.constant 0 : index
      %370 = vector.load %arg11[%c0_136, %c0_137] : memref<2x32xf32, #tpu.memory_space<vmem>>, vector<2x32xf32>
      tpu.vector_store %arg11[%c0_136, %c0_137], %369 {strides = array<i32>} : memref<2x32xf32, #tpu.memory_space<vmem>>, vector<2x32xf32>,
      %c0_138 = arith.constant 0 : index
      %c0_139 = arith.constant 0 : index
      %371 = vector.load %arg6[%c0_138, %c0_139] : memref<2x4xf32, #tpu.memory_space<vmem>>, vector<2x4xf32>
      %c0_140 = arith.constant 0 : index
      %c0_141 = arith.constant 0 : index
      %372 = vector.load %arg12[%c0_140, %c0_141] : memref<2x4xf32, #tpu.memory_space<vmem>>, vector<2x4xf32>
      tpu.vector_store %arg12[%c0_140, %c0_141], %371 {strides = array<i32>} : memref<2x4xf32, #tpu.memory_space<vmem>>, vector<2x4xf32>,
      %c0_142 = arith.constant 0 : index
      %c0_143 = arith.constant 0 : index
      %373 = vector.load %arg6[%c0_142, %c0_143] : memref<2x4xf32, #tpu.memory_space<vmem>>, vector<2x4xf32>
      %c0_144 = arith.constant 0 : index
      %c0_145 = arith.constant 0 : index
      %374 = vector.load %arg13[%c0_144, %c0_145] : memref<2x4xf32, #tpu.memory_space<vmem>>, vector<2x4xf32>
      tpu.vector_store %arg13[%c0_144, %c0_145], %373 {strides = array<i32>} : memref<2x4xf32, #tpu.memory_space<vmem>>, vector<2x4xf32>,
      %cst_146 = arith.constant 0.00999999977 : f32
      %375 = vector.broadcast %cst_146 : f32 to vector<2x4xf32>
      %c0_147 = arith.constant 0 : index
      %c0_148 = arith.constant 0 : index
      %376 = vector.load %arg14[%c0_147, %c0_148] : memref<2x4xf32, #tpu.memory_space<vmem>>, vector<2x4xf32>
      tpu.vector_store %arg14[%c0_147, %c0_148], %375 {strides = array<i32>} : memref<2x4xf32, #tpu.memory_space<vmem>>, vector<2x4xf32>,
    } else {
    }
    %c0 = arith.constant 0 : index
    %c0_1 = arith.constant 0 : index
    %3 = vector.load %arg2[%c0, %c0_1] : memref<32x36xbf16, #tpu.memory_space<vmem>>, vector<32x36xbf16>
    %c0_2 = arith.constant 0 : index
    %c0_3 = arith.constant 0 : index
    %4 = vector.load %arg3[%c0_2, %c0_3] : memref<1x32xf32, #tpu.memory_space<vmem>>, vector<1x32xf32>
    %5 = vector.shape_cast %4 : vector<1x32xf32> to vector<1x32xf32>
    %6 = vector.broadcast %5 : vector<1x32xf32> to vector<2x32xf32>
    %c0_4 = arith.constant 0 : index
    %c0_5 = arith.constant 0 : index
    %7 = vector.load %arg4[%c0_4, %c0_5] : memref<4x4xf32, #tpu.memory_space<vmem>>, vector<4x4xf32>
    %8 = vector.extract_strided_slice %7 {offsets = [0, 0], sizes = [1, 4], strides = [1, 1]} : vector<4x4xf32> to vector<1x4xf32>
    %9 = vector.shape_cast %8 : vector<1x4xf32> to vector<1x4xf32>
    %10 = vector.broadcast %9 : vector<1x4xf32> to vector<2x4xf32>
    %11 = vector.extract_strided_slice %7 {offsets = [1, 0], sizes = [1, 4], strides = [1, 1]} : vector<4x4xf32> to vector<1x4xf32>
    %12 = vector.shape_cast %11 : vector<1x4xf32> to vector<1x4xf32>
    %13 = vector.broadcast %12 : vector<1x4xf32> to vector<2x4xf32>
    %14 = vector.extract_strided_slice %7 {offsets = [2, 0], sizes = [1, 4], strides = [1, 1]} : vector<4x4xf32> to vector<1x4xf32>
    %15 = vector.shape_cast %14 : vector<1x4xf32> to vector<1x4xf32>
    %16 = vector.broadcast %15 : vector<1x4xf32> to vector<2x4xf32>
    %17 = vector.extract_strided_slice %7 {offsets = [3, 0], sizes = [1, 4], strides = [1, 1]} : vector<4x4xf32> to vector<1x4xf32>
    %18 = vector.shape_cast %17 : vector<1x4xf32> to vector<1x4xf32>
    %19 = vector.broadcast %18 : vector<1x4xf32> to vector<2x4xf32>
    %c0_6 = arith.constant 0 : index
    %c0_7 = arith.constant 0 : index
    %20 = vector.load %arg9[%c0_6, %c0_7] : memref<2x32xf32, #tpu.memory_space<vmem>>, vector<2x32xf32>
    %c0_8 = arith.constant 0 : index
    %c0_9 = arith.constant 0 : index
    %21 = vector.load %arg10[%c0_8, %c0_9] : memref<2x32xf32, #tpu.memory_space<vmem>>, vector<2x32xf32>
    %c0_10 = arith.constant 0 : index
    %c0_11 = arith.constant 0 : index
    %22 = vector.load %arg11[%c0_10, %c0_11] : memref<2x32xf32, #tpu.memory_space<vmem>>, vector<2x32xf32>
    %c0_12 = arith.constant 0 : index
    %c0_13 = arith.constant 0 : index
    %23 = vector.load %arg12[%c0_12, %c0_13] : memref<2x4xf32, #tpu.memory_space<vmem>>, vector<2x4xf32>
    %c0_14 = arith.constant 0 : index
    %c0_15 = arith.constant 0 : index
    %24 = vector.load %arg13[%c0_14, %c0_15] : memref<2x4xf32, #tpu.memory_space<vmem>>, vector<2x4xf32>
    %c0_16 = arith.constant 0 : index
    %c0_17 = arith.constant 0 : index
    %25 = vector.load %arg14[%c0_16, %c0_17] : memref<2x4xf32, #tpu.memory_space<vmem>>, vector<2x4xf32>
    %c0_i32_18 = arith.constant 0 : i32
    %26 = arith.mulf %20, %6 : vector<2x32xf32>
    %27 = arith.index_cast %c0_i32_18 : i32 to index
    %c0_19 = arith.constant 0 : index
    %c0_20 = arith.constant 0 : index
    %28 = vector.load %arg1[%27, %c0_19, %c0_20] : memref<8x2x32xf32, #tpu.memory_space<vmem>>, vector<1x2x32xf32>
    %29 = vector.shape_cast %28 : vector<1x2x32xf32> to vector<2x32xf32>
    %30 = arith.addf %26, %29 : vector<2x32xf32>
    %31 = arith.addf %30, %22 : vector<2x32xf32>
    %cst = arith.constant 0.00999999977 : f32
    %32 = vector.broadcast %cst : f32 to vector<2x32xf32>
    %33 = arith.mulf %32, %21 : vector<2x32xf32>
    %34 = arith.subf %31, %33 : vector<2x32xf32>
    %cst_21 = arith.constant 0.00999999977 : f32
    %35 = vector.broadcast %cst_21 : f32 to vector<2x32xf32>
    %36 = arith.subf %34, %35 : vector<2x32xf32>
    %cst_22 = arith.constant 0.000000e+00 : f32
    %37 = vector.broadcast %cst_22 : f32 to vector<2x32xf32>
    %38 = arith.cmpf ogt, %36, %37 : vector<2x32xf32>
    %39 = arith.extui %38 : vector<2x32xi1> to vector<2x32xi32>
    %40 = arith.sitofp %39 : vector<2x32xi32> to vector<2x32xf32>
    %41 = arith.truncf %40 : vector<2x32xf32> to vector<2x32xbf16>
    %cst_23 = arith.constant dense<0.000000e+00> : vector<2x36xf32>
    %42 = tpu.matmul %41, %3, %cst_23 {dimension_numbers = #tpu.dot_dimension_numbers<[1], [0], [0], [1], [0, 0, 1, 1], [], []>} : vector<2x32xbf16>, vector<32x36xbf16>, vector<2x36xf32> -> vector<2x36xf32>
    %43 = vector.extract_strided_slice %42 {offsets = [0, 0], sizes = [2, 32], strides = [1, 1]} : vector<2x36xf32> to vector<2x32xf32>
    %44 = vector.extract_strided_slice %42 {offsets = [0, 32], sizes = [2, 4], strides = [1, 1]} : vector<2x36xf32> to vector<2x4xf32>
    %45 = arith.addf %44, %19 : vector<2x4xf32>
    %46 = arith.mulf %13, %25 : vector<2x4xf32>
    %47 = arith.mulf %16, %24 : vector<2x4xf32>
    %48 = arith.addf %46, %47 : vector<2x4xf32>
    %cst_24 = arith.constant 1.800000e+00 : f32
    %49 = vector.broadcast %cst_24 : f32 to vector<2x4xf32>
    %50 = arith.mulf %49, %48 : vector<2x4xf32>
    %cst_25 = arith.constant 0.00999999977 : f32
    %51 = vector.broadcast %cst_25 : f32 to vector<2x4xf32>
    %52 = arith.addf %51, %50 : vector<2x4xf32>
    %53 = arith.mulf %23, %10 : vector<2x4xf32>
    %54 = arith.addf %53, %45 : vector<2x4xf32>
    %55 = arith.mulf %52, %24 : vector<2x4xf32>
    %56 = arith.subf %54, %55 : vector<2x4xf32>
    %57 = arith.subf %56, %52 : vector<2x4xf32>
    %cst_26 = arith.constant 0.000000e+00 : f32
    %58 = vector.broadcast %cst_26 : f32 to vector<2x4xf32>
    %59 = arith.cmpf ogt, %57, %58 : vector<2x4xf32>
    %60 = arith.extui %59 : vector<2x4xi1> to vector<2x4xi32>
    %61 = arith.sitofp %60 : vector<2x4xi32> to vector<2x4xf32>
    %62 = arith.index_cast %c0_i32_18 : i32 to index
    %c0_27 = arith.constant 0 : index
    %c0_28 = arith.constant 0 : index
    %63 = vector.load %arg8[%62, %c0_27, %c0_28] : memref<8x2x4xf32, #tpu.memory_space<vmem>>, vector<1x2x4xf32>
    %64 = vector.shape_cast %63 : vector<1x2x4xf32> to vector<2x4xf32>
    %65 = vector.shape_cast %56 : vector<2x4xf32> to vector<1x2x4xf32>
    tpu.vector_store %arg8[%62, %c0_27, %c0_28], %65 {strides = array<i32>} : memref<8x2x4xf32, #tpu.memory_space<vmem>>, vector<1x2x4xf32>,
    %c1_i32 = arith.constant 1 : i32
    %66 = arith.mulf %34, %6 : vector<2x32xf32>
    %67 = arith.index_cast %c1_i32 : i32 to index
    %c0_29 = arith.constant 0 : index
    %c0_30 = arith.constant 0 : index
    %68 = vector.load %arg1[%67, %c0_29, %c0_30] : memref<8x2x32xf32, #tpu.memory_space<vmem>>, vector<1x2x32xf32>
    %69 = vector.shape_cast %68 : vector<1x2x32xf32> to vector<2x32xf32>
    %70 = arith.addf %66, %69 : vector<2x32xf32>
    %71 = arith.addf %70, %43 : vector<2x32xf32>
    %cst_31 = arith.constant 0.00999999977 : f32
    %72 = vector.broadcast %cst_31 : f32 to vector<2x32xf32>
    %73 = arith.mulf %72, %40 : vector<2x32xf32>
    %74 = arith.subf %71, %73 : vector<2x32xf32>
    %cst_32 = arith.constant 0.00999999977 : f32
    %75 = vector.broadcast %cst_32 : f32 to vector<2x32xf32>
    %76 = arith.subf %74, %75 : vector<2x32xf32>
    %cst_33 = arith.constant 0.000000e+00 : f32
    %77 = vector.broadcast %cst_33 : f32 to vector<2x32xf32>
    %78 = arith.cmpf ogt, %76, %77 : vector<2x32xf32>
    %79 = arith.extui %78 : vector<2x32xi1> to vector<2x32xi32>
    %80 = arith.sitofp %79 : vector<2x32xi32> to vector<2x32xf32>
    %81 = arith.truncf %80 : vector<2x32xf32> to vector<2x32xbf16>
    %cst_34 = arith.constant dense<0.000000e+00> : vector<2x36xf32>
    %82 = tpu.matmul %81, %3, %cst_34 {dimension_numbers = #tpu.dot_dimension_numbers<[1], [0], [0], [1], [0, 0, 1, 1], [], []>} : vector<2x32xbf16>, vector<32x36xbf16>, vector<2x36xf32> -> vector<2x36xf32>
    %83 = vector.extract_strided_slice %82 {offsets = [0, 0], sizes = [2, 32], strides = [1, 1]} : vector<2x36xf32> to vector<2x32xf32>
    %84 = vector.extract_strided_slice %82 {offsets = [0, 32], sizes = [2, 4], strides = [1, 1]} : vector<2x36xf32> to vector<2x4xf32>
    %85 = arith.addf %84, %19 : vector<2x4xf32>
    %86 = arith.mulf %13, %48 : vector<2x4xf32>
    %87 = arith.mulf %16, %61 : vector<2x4xf32>
    %88 = arith.addf %86, %87 : vector<2x4xf32>
    %cst_35 = arith.constant 1.800000e+00 : f32
    %89 = vector.broadcast %cst_35 : f32 to vector<2x4xf32>
    %90 = arith.mulf %89, %88 : vector<2x4xf32>
    %cst_36 = arith.constant 0.00999999977 : f32
    %91 = vector.broadcast %cst_36 : f32 to vector<2x4xf32>
    %92 = arith.addf %91, %90 : vector<2x4xf32>
    %93 = arith.mulf %56, %10 : vector<2x4xf32>
    %94 = arith.addf %93, %85 : vector<2x4xf32>
    %95 = arith.mulf %92, %61 : vector<2x4xf32>
    %96 = arith.subf %94, %95 : vector<2x4xf32>
    %97 = arith.subf %96, %92 : vector<2x4xf32>
    %cst_37 = arith.constant 0.000000e+00 : f32
    %98 = vector.broadcast %cst_37 : f32 to vector<2x4xf32>
    %99 = arith.cmpf ogt, %97, %98 : vector<2x4xf32>
    %100 = arith.extui %99 : vector<2x4xi1> to vector<2x4xi32>
    %101 = arith.sitofp %100 : vector<2x4xi32> to vector<2x4xf32>
    %102 = arith.index_cast %c1_i32 : i32 to index
    %c0_38 = arith.constant 0 : index
    %c0_39 = arith.constant 0 : index
    %103 = vector.load %arg8[%102, %c0_38, %c0_39] : memref<8x2x4xf32, #tpu.memory_space<vmem>>, vector<1x2x4xf32>
    %104 = vector.shape_cast %103 : vector<1x2x4xf32> to vector<2x4xf32>
    %105 = vector.shape_cast %96 : vector<2x4xf32> to vector<1x2x4xf32>
    tpu.vector_store %arg8[%102, %c0_38, %c0_39], %105 {strides = array<i32>} : memref<8x2x4xf32, #tpu.memory_space<vmem>>, vector<1x2x4xf32>,
    %c2_i32 = arith.constant 2 : i32
    %106 = arith.mulf %74, %6 : vector<2x32xf32>
    %107 = arith.index_cast %c2_i32 : i32 to index
    %c0_40 = arith.constant 0 : index
    %c0_41 = arith.constant 0 : index
    %108 = vector.load %arg1[%107, %c0_40, %c0_41] : memref<8x2x32xf32, #tpu.memory_space<vmem>>, vector<1x2x32xf32>
    %109 = vector.shape_cast %108 : vector<1x2x32xf32> to vector<2x32xf32>
    %110 = arith.addf %106, %109 : vector<2x32xf32>
    %111 = arith.addf %110, %83 : vector<2x32xf32>
    %cst_42 = arith.constant 0.00999999977 : f32
    %112 = vector.broadcast %cst_42 : f32 to vector<2x32xf32>
    %113 = arith.mulf %112, %80 : vector<2x32xf32>
    %114 = arith.subf %111, %113 : vector<2x32xf32>
    %cst_43 = arith.constant 0.00999999977 : f32
    %115 = vector.broadcast %cst_43 : f32 to vector<2x32xf32>
    %116 = arith.subf %114, %115 : vector<2x32xf32>
    %cst_44 = arith.constant 0.000000e+00 : f32
    %117 = vector.broadcast %cst_44 : f32 to vector<2x32xf32>
    %118 = arith.cmpf ogt, %116, %117 : vector<2x32xf32>
    %119 = arith.extui %118 : vector<2x32xi1> to vector<2x32xi32>
    %120 = arith.sitofp %119 : vector<2x32xi32> to vector<2x32xf32>
    %121 = arith.truncf %120 : vector<2x32xf32> to vector<2x32xbf16>
    %cst_45 = arith.constant dense<0.000000e+00> : vector<2x36xf32>
    %122 = tpu.matmul %121, %3, %cst_45 {dimension_numbers = #tpu.dot_dimension_numbers<[1], [0], [0], [1], [0, 0, 1, 1], [], []>} : vector<2x32xbf16>, vector<32x36xbf16>, vector<2x36xf32> -> vector<2x36xf32>
    %123 = vector.extract_strided_slice %122 {offsets = [0, 0], sizes = [2, 32], strides = [1, 1]} : vector<2x36xf32> to vector<2x32xf32>
    %124 = vector.extract_strided_slice %122 {offsets = [0, 32], sizes = [2, 4], strides = [1, 1]} : vector<2x36xf32> to vector<2x4xf32>
    %125 = arith.addf %124, %19 : vector<2x4xf32>
    %126 = arith.mulf %13, %88 : vector<2x4xf32>
    %127 = arith.mulf %16, %101 : vector<2x4xf32>
    %128 = arith.addf %126, %127 : vector<2x4xf32>
    %cst_46 = arith.constant 1.800000e+00 : f32
    %129 = vector.broadcast %cst_46 : f32 to vector<2x4xf32>
    %130 = arith.mulf %129, %128 : vector<2x4xf32>
    %cst_47 = arith.constant 0.00999999977 : f32
    %131 = vector.broadcast %cst_47 : f32 to vector<2x4xf32>
    %132 = arith.addf %131, %130 : vector<2x4xf32>
    %133 = arith.mulf %96, %10 : vector<2x4xf32>
    %134 = arith.addf %133, %125 : vector<2x4xf32>
    %135 = arith.mulf %132, %101 : vector<2x4xf32>
    %136 = arith.subf %134, %135 : vector<2x4xf32>
    %137 = arith.subf %136, %132 : vector<2x4xf32>
    %cst_48 = arith.constant 0.000000e+00 : f32
    %138 = vector.broadcast %cst_48 : f32 to vector<2x4xf32>
    %139 = arith.cmpf ogt, %137, %138 : vector<2x4xf32>
    %140 = arith.extui %139 : vector<2x4xi1> to vector<2x4xi32>
    %141 = arith.sitofp %140 : vector<2x4xi32> to vector<2x4xf32>
    %142 = arith.index_cast %c2_i32 : i32 to index
    %c0_49 = arith.constant 0 : index
    %c0_50 = arith.constant 0 : index
    %143 = vector.load %arg8[%142, %c0_49, %c0_50] : memref<8x2x4xf32, #tpu.memory_space<vmem>>, vector<1x2x4xf32>
    %144 = vector.shape_cast %143 : vector<1x2x4xf32> to vector<2x4xf32>
    %145 = vector.shape_cast %136 : vector<2x4xf32> to vector<1x2x4xf32>
    tpu.vector_store %arg8[%142, %c0_49, %c0_50], %145 {strides = array<i32>} : memref<8x2x4xf32, #tpu.memory_space<vmem>>, vector<1x2x4xf32>,
    %c3_i32 = arith.constant 3 : i32
    %146 = arith.mulf %114, %6 : vector<2x32xf32>
    %147 = arith.index_cast %c3_i32 : i32 to index
    %c0_51 = arith.constant 0 : index
    %c0_52 = arith.constant 0 : index
    %148 = vector.load %arg1[%147, %c0_51, %c0_52] : memref<8x2x32xf32, #tpu.memory_space<vmem>>, vector<1x2x32xf32>
    %149 = vector.shape_cast %148 : vector<1x2x32xf32> to vector<2x32xf32>
    %150 = arith.addf %146, %149 : vector<2x32xf32>
    %151 = arith.addf %150, %123 : vector<2x32xf32>
    %cst_53 = arith.constant 0.00999999977 : f32
    %152 = vector.broadcast %cst_53 : f32 to vector<2x32xf32>
    %153 = arith.mulf %152, %120 : vector<2x32xf32>
    %154 = arith.subf %151, %153 : vector<2x32xf32>
    %cst_54 = arith.constant 0.00999999977 : f32
    %155 = vector.broadcast %cst_54 : f32 to vector<2x32xf32>
    %156 = arith.subf %154, %155 : vector<2x32xf32>
    %cst_55 = arith.constant 0.000000e+00 : f32
    %157 = vector.broadcast %cst_55 : f32 to vector<2x32xf32>
    %158 = arith.cmpf ogt, %156, %157 : vector<2x32xf32>
    %159 = arith.extui %158 : vector<2x32xi1> to vector<2x32xi32>
    %160 = arith.sitofp %159 : vector<2x32xi32> to vector<2x32xf32>
    %161 = arith.truncf %160 : vector<2x32xf32> to vector<2x32xbf16>
    %cst_56 = arith.constant dense<0.000000e+00> : vector<2x36xf32>
    %162 = tpu.matmul %161, %3, %cst_56 {dimension_numbers = #tpu.dot_dimension_numbers<[1], [0], [0], [1], [0, 0, 1, 1], [], []>} : vector<2x32xbf16>, vector<32x36xbf16>, vector<2x36xf32> -> vector<2x36xf32>
    %163 = vector.extract_strided_slice %162 {offsets = [0, 0], sizes = [2, 32], strides = [1, 1]} : vector<2x36xf32> to vector<2x32xf32>
    %164 = vector.extract_strided_slice %162 {offsets = [0, 32], sizes = [2, 4], strides = [1, 1]} : vector<2x36xf32> to vector<2x4xf32>
    %165 = arith.addf %164, %19 : vector<2x4xf32>
    %166 = arith.mulf %13, %128 : vector<2x4xf32>
    %167 = arith.mulf %16, %141 : vector<2x4xf32>
    %168 = arith.addf %166, %167 : vector<2x4xf32>
    %cst_57 = arith.constant 1.800000e+00 : f32
    %169 = vector.broadcast %cst_57 : f32 to vector<2x4xf32>
    %170 = arith.mulf %169, %168 : vector<2x4xf32>
    %cst_58 = arith.constant 0.00999999977 : f32
    %171 = vector.broadcast %cst_58 : f32 to vector<2x4xf32>
    %172 = arith.addf %171, %170 : vector<2x4xf32>
    %173 = arith.mulf %136, %10 : vector<2x4xf32>
    %174 = arith.addf %173, %165 : vector<2x4xf32>
    %175 = arith.mulf %172, %141 : vector<2x4xf32>
    %176 = arith.subf %174, %175 : vector<2x4xf32>
    %177 = arith.subf %176, %172 : vector<2x4xf32>
    %cst_59 = arith.constant 0.000000e+00 : f32
    %178 = vector.broadcast %cst_59 : f32 to vector<2x4xf32>
    %179 = arith.cmpf ogt, %177, %178 : vector<2x4xf32>
    %180 = arith.extui %179 : vector<2x4xi1> to vector<2x4xi32>
    %181 = arith.sitofp %180 : vector<2x4xi32> to vector<2x4xf32>
    %182 = arith.index_cast %c3_i32 : i32 to index
    %c0_60 = arith.constant 0 : index
    %c0_61 = arith.constant 0 : index
    %183 = vector.load %arg8[%182, %c0_60, %c0_61] : memref<8x2x4xf32, #tpu.memory_space<vmem>>, vector<1x2x4xf32>
    %184 = vector.shape_cast %183 : vector<1x2x4xf32> to vector<2x4xf32>
    %185 = vector.shape_cast %176 : vector<2x4xf32> to vector<1x2x4xf32>
    tpu.vector_store %arg8[%182, %c0_60, %c0_61], %185 {strides = array<i32>} : memref<8x2x4xf32, #tpu.memory_space<vmem>>, vector<1x2x4xf32>,
    %c4_i32 = arith.constant 4 : i32
    %186 = arith.mulf %154, %6 : vector<2x32xf32>
    %187 = arith.index_cast %c4_i32 : i32 to index
    %c0_62 = arith.constant 0 : index
    %c0_63 = arith.constant 0 : index
    %188 = vector.load %arg1[%187, %c0_62, %c0_63] : memref<8x2x32xf32, #tpu.memory_space<vmem>>, vector<1x2x32xf32>
    %189 = vector.shape_cast %188 : vector<1x2x32xf32> to vector<2x32xf32>
    %190 = arith.addf %186, %189 : vector<2x32xf32>
    %191 = arith.addf %190, %163 : vector<2x32xf32>
    %cst_64 = arith.constant 0.00999999977 : f32
    %192 = vector.broadcast %cst_64 : f32 to vector<2x32xf32>
    %193 = arith.mulf %192, %160 : vector<2x32xf32>
    %194 = arith.subf %191, %193 : vector<2x32xf32>
    %cst_65 = arith.constant 0.00999999977 : f32
    %195 = vector.broadcast %cst_65 : f32 to vector<2x32xf32>
    %196 = arith.subf %194, %195 : vector<2x32xf32>
    %cst_66 = arith.constant 0.000000e+00 : f32
    %197 = vector.broadcast %cst_66 : f32 to vector<2x32xf32>
    %198 = arith.cmpf ogt, %196, %197 : vector<2x32xf32>
    %199 = arith.extui %198 : vector<2x32xi1> to vector<2x32xi32>
    %200 = arith.sitofp %199 : vector<2x32xi32> to vector<2x32xf32>
    %201 = arith.truncf %200 : vector<2x32xf32> to vector<2x32xbf16>
    %cst_67 = arith.constant dense<0.000000e+00> : vector<2x36xf32>
    %202 = tpu.matmul %201, %3, %cst_67 {dimension_numbers = #tpu.dot_dimension_numbers<[1], [0], [0], [1], [0, 0, 1, 1], [], []>} : vector<2x32xbf16>, vector<32x36xbf16>, vector<2x36xf32> -> vector<2x36xf32>
    %203 = vector.extract_strided_slice %202 {offsets = [0, 0], sizes = [2, 32], strides = [1, 1]} : vector<2x36xf32> to vector<2x32xf32>
    %204 = vector.extract_strided_slice %202 {offsets = [0, 32], sizes = [2, 4], strides = [1, 1]} : vector<2x36xf32> to vector<2x4xf32>
    %205 = arith.addf %204, %19 : vector<2x4xf32>
    %206 = arith.mulf %13, %168 : vector<2x4xf32>
    %207 = arith.mulf %16, %181 : vector<2x4xf32>
    %208 = arith.addf %206, %207 : vector<2x4xf32>
    %cst_68 = arith.constant 1.800000e+00 : f32
    %209 = vector.broadcast %cst_68 : f32 to vector<2x4xf32>
    %210 = arith.mulf %209, %208 : vector<2x4xf32>
    %cst_69 = arith.constant 0.00999999977 : f32
    %211 = vector.broadcast %cst_69 : f32 to vector<2x4xf32>
    %212 = arith.addf %211, %210 : vector<2x4xf32>
    %213 = arith.mulf %176, %10 : vector<2x4xf32>
    %214 = arith.addf %213, %205 : vector<2x4xf32>
    %215 = arith.mulf %212, %181 : vector<2x4xf32>
    %216 = arith.subf %214, %215 : vector<2x4xf32>
    %217 = arith.subf %216, %212 : vector<2x4xf32>
    %cst_70 = arith.constant 0.000000e+00 : f32
    %218 = vector.broadcast %cst_70 : f32 to vector<2x4xf32>
    %219 = arith.cmpf ogt, %217, %218 : vector<2x4xf32>
    %220 = arith.extui %219 : vector<2x4xi1> to vector<2x4xi32>
    %221 = arith.sitofp %220 : vector<2x4xi32> to vector<2x4xf32>
    %222 = arith.index_cast %c4_i32 : i32 to index
    %c0_71 = arith.constant 0 : index
    %c0_72 = arith.constant 0 : index
    %223 = vector.load %arg8[%222, %c0_71, %c0_72] : memref<8x2x4xf32, #tpu.memory_space<vmem>>, vector<1x2x4xf32>
    %224 = vector.shape_cast %223 : vector<1x2x4xf32> to vector<2x4xf32>
    %225 = vector.shape_cast %216 : vector<2x4xf32> to vector<1x2x4xf32>
    tpu.vector_store %arg8[%222, %c0_71, %c0_72], %225 {strides = array<i32>} : memref<8x2x4xf32, #tpu.memory_space<vmem>>, vector<1x2x4xf32>,
    %c5_i32 = arith.constant 5 : i32
    %226 = arith.mulf %194, %6 : vector<2x32xf32>
    %227 = arith.index_cast %c5_i32 : i32 to index
    %c0_73 = arith.constant 0 : index
    %c0_74 = arith.constant 0 : index
    %228 = vector.load %arg1[%227, %c0_73, %c0_74] : memref<8x2x32xf32, #tpu.memory_space<vmem>>, vector<1x2x32xf32>
    %229 = vector.shape_cast %228 : vector<1x2x32xf32> to vector<2x32xf32>
    %230 = arith.addf %226, %229 : vector<2x32xf32>
    %231 = arith.addf %230, %203 : vector<2x32xf32>
    %cst_75 = arith.constant 0.00999999977 : f32
    %232 = vector.broadcast %cst_75 : f32 to vector<2x32xf32>
    %233 = arith.mulf %232, %200 : vector<2x32xf32>
    %234 = arith.subf %231, %233 : vector<2x32xf32>
    %cst_76 = arith.constant 0.00999999977 : f32
    %235 = vector.broadcast %cst_76 : f32 to vector<2x32xf32>
    %236 = arith.subf %234, %235 : vector<2x32xf32>
    %cst_77 = arith.constant 0.000000e+00 : f32
    %237 = vector.broadcast %cst_77 : f32 to vector<2x32xf32>
    %238 = arith.cmpf ogt, %236, %237 : vector<2x32xf32>
    %239 = arith.extui %238 : vector<2x32xi1> to vector<2x32xi32>
    %240 = arith.sitofp %239 : vector<2x32xi32> to vector<2x32xf32>
    %241 = arith.truncf %240 : vector<2x32xf32> to vector<2x32xbf16>
    %cst_78 = arith.constant dense<0.000000e+00> : vector<2x36xf32>
    %242 = tpu.matmul %241, %3, %cst_78 {dimension_numbers = #tpu.dot_dimension_numbers<[1], [0], [0], [1], [0, 0, 1, 1], [], []>} : vector<2x32xbf16>, vector<32x36xbf16>, vector<2x36xf32> -> vector<2x36xf32>
    %243 = vector.extract_strided_slice %242 {offsets = [0, 0], sizes = [2, 32], strides = [1, 1]} : vector<2x36xf32> to vector<2x32xf32>
    %244 = vector.extract_strided_slice %242 {offsets = [0, 32], sizes = [2, 4], strides = [1, 1]} : vector<2x36xf32> to vector<2x4xf32>
    %245 = arith.addf %244, %19 : vector<2x4xf32>
    %246 = arith.mulf %13, %208 : vector<2x4xf32>
    %247 = arith.mulf %16, %221 : vector<2x4xf32>
    %248 = arith.addf %246, %247 : vector<2x4xf32>
    %cst_79 = arith.constant 1.800000e+00 : f32
    %249 = vector.broadcast %cst_79 : f32 to vector<2x4xf32>
    %250 = arith.mulf %249, %248 : vector<2x4xf32>
    %cst_80 = arith.constant 0.00999999977 : f32
    %251 = vector.broadcast %cst_80 : f32 to vector<2x4xf32>
    %252 = arith.addf %251, %250 : vector<2x4xf32>
    %253 = arith.mulf %216, %10 : vector<2x4xf32>
    %254 = arith.addf %253, %245 : vector<2x4xf32>
    %255 = arith.mulf %252, %221 : vector<2x4xf32>
    %256 = arith.subf %254, %255 : vector<2x4xf32>
    %257 = arith.subf %256, %252 : vector<2x4xf32>
    %cst_81 = arith.constant 0.000000e+00 : f32
    %258 = vector.broadcast %cst_81 : f32 to vector<2x4xf32>
    %259 = arith.cmpf ogt, %257, %258 : vector<2x4xf32>
    %260 = arith.extui %259 : vector<2x4xi1> to vector<2x4xi32>
    %261 = arith.sitofp %260 : vector<2x4xi32> to vector<2x4xf32>
    %262 = arith.index_cast %c5_i32 : i32 to index
    %c0_82 = arith.constant 0 : index
    %c0_83 = arith.constant 0 : index
    %263 = vector.load %arg8[%262, %c0_82, %c0_83] : memref<8x2x4xf32, #tpu.memory_space<vmem>>, vector<1x2x4xf32>
    %264 = vector.shape_cast %263 : vector<1x2x4xf32> to vector<2x4xf32>
    %265 = vector.shape_cast %256 : vector<2x4xf32> to vector<1x2x4xf32>
    tpu.vector_store %arg8[%262, %c0_82, %c0_83], %265 {strides = array<i32>} : memref<8x2x4xf32, #tpu.memory_space<vmem>>, vector<1x2x4xf32>,
    %c6_i32 = arith.constant 6 : i32
    %266 = arith.mulf %234, %6 : vector<2x32xf32>
    %267 = arith.index_cast %c6_i32 : i32 to index
    %c0_84 = arith.constant 0 : index
    %c0_85 = arith.constant 0 : index
    %268 = vector.load %arg1[%267, %c0_84, %c0_85] : memref<8x2x32xf32, #tpu.memory_space<vmem>>, vector<1x2x32xf32>
    %269 = vector.shape_cast %268 : vector<1x2x32xf32> to vector<2x32xf32>
    %270 = arith.addf %266, %269 : vector<2x32xf32>
    %271 = arith.addf %270, %243 : vector<2x32xf32>
    %cst_86 = arith.constant 0.00999999977 : f32
    %272 = vector.broadcast %cst_86 : f32 to vector<2x32xf32>
    %273 = arith.mulf %272, %240 : vector<2x32xf32>
    %274 = arith.subf %271, %273 : vector<2x32xf32>
    %cst_87 = arith.constant 0.00999999977 : f32
    %275 = vector.broadcast %cst_87 : f32 to vector<2x32xf32>
    %276 = arith.subf %274, %275 : vector<2x32xf32>
    %cst_88 = arith.constant 0.000000e+00 : f32
    %277 = vector.broadcast %cst_88 : f32 to vector<2x32xf32>
    %278 = arith.cmpf ogt, %276, %277 : vector<2x32xf32>
    %279 = arith.extui %278 : vector<2x32xi1> to vector<2x32xi32>
    %280 = arith.sitofp %279 : vector<2x32xi32> to vector<2x32xf32>
    %281 = arith.truncf %280 : vector<2x32xf32> to vector<2x32xbf16>
    %cst_89 = arith.constant dense<0.000000e+00> : vector<2x36xf32>
    %282 = tpu.matmul %281, %3, %cst_89 {dimension_numbers = #tpu.dot_dimension_numbers<[1], [0], [0], [1], [0, 0, 1, 1], [], []>} : vector<2x32xbf16>, vector<32x36xbf16>, vector<2x36xf32> -> vector<2x36xf32>
    %283 = vector.extract_strided_slice %282 {offsets = [0, 0], sizes = [2, 32], strides = [1, 1]} : vector<2x36xf32> to vector<2x32xf32>
    %284 = vector.extract_strided_slice %282 {offsets = [0, 32], sizes = [2, 4], strides = [1, 1]} : vector<2x36xf32> to vector<2x4xf32>
    %285 = arith.addf %284, %19 : vector<2x4xf32>
    %286 = arith.mulf %13, %248 : vector<2x4xf32>
    %287 = arith.mulf %16, %261 : vector<2x4xf32>
    %288 = arith.addf %286, %287 : vector<2x4xf32>
    %cst_90 = arith.constant 1.800000e+00 : f32
    %289 = vector.broadcast %cst_90 : f32 to vector<2x4xf32>
    %290 = arith.mulf %289, %288 : vector<2x4xf32>
    %cst_91 = arith.constant 0.00999999977 : f32
    %291 = vector.broadcast %cst_91 : f32 to vector<2x4xf32>
    %292 = arith.addf %291, %290 : vector<2x4xf32>
    %293 = arith.mulf %256, %10 : vector<2x4xf32>
    %294 = arith.addf %293, %285 : vector<2x4xf32>
    %295 = arith.mulf %292, %261 : vector<2x4xf32>
    %296 = arith.subf %294, %295 : vector<2x4xf32>
    %297 = arith.subf %296, %292 : vector<2x4xf32>
    %cst_92 = arith.constant 0.000000e+00 : f32
    %298 = vector.broadcast %cst_92 : f32 to vector<2x4xf32>
    %299 = arith.cmpf ogt, %297, %298 : vector<2x4xf32>
    %300 = arith.extui %299 : vector<2x4xi1> to vector<2x4xi32>
    %301 = arith.sitofp %300 : vector<2x4xi32> to vector<2x4xf32>
    %302 = arith.index_cast %c6_i32 : i32 to index
    %c0_93 = arith.constant 0 : index
    %c0_94 = arith.constant 0 : index
    %303 = vector.load %arg8[%302, %c0_93, %c0_94] : memref<8x2x4xf32, #tpu.memory_space<vmem>>, vector<1x2x4xf32>
    %304 = vector.shape_cast %303 : vector<1x2x4xf32> to vector<2x4xf32>
    %305 = vector.shape_cast %296 : vector<2x4xf32> to vector<1x2x4xf32>
    tpu.vector_store %arg8[%302, %c0_93, %c0_94], %305 {strides = array<i32>} : memref<8x2x4xf32, #tpu.memory_space<vmem>>, vector<1x2x4xf32>,
    %c7_i32 = arith.constant 7 : i32
    %306 = arith.mulf %274, %6 : vector<2x32xf32>
    %307 = arith.index_cast %c7_i32 : i32 to index
    %c0_95 = arith.constant 0 : index
    %c0_96 = arith.constant 0 : index
    %308 = vector.load %arg1[%307, %c0_95, %c0_96] : memref<8x2x32xf32, #tpu.memory_space<vmem>>, vector<1x2x32xf32>
    %309 = vector.shape_cast %308 : vector<1x2x32xf32> to vector<2x32xf32>
    %310 = arith.addf %306, %309 : vector<2x32xf32>
    %311 = arith.addf %310, %283 : vector<2x32xf32>
    %cst_97 = arith.constant 0.00999999977 : f32
    %312 = vector.broadcast %cst_97 : f32 to vector<2x32xf32>
    %313 = arith.mulf %312, %280 : vector<2x32xf32>
    %314 = arith.subf %311, %313 : vector<2x32xf32>
    %cst_98 = arith.constant 0.00999999977 : f32
    %315 = vector.broadcast %cst_98 : f32 to vector<2x32xf32>
    %316 = arith.subf %314, %315 : vector<2x32xf32>
    %cst_99 = arith.constant 0.000000e+00 : f32
    %317 = vector.broadcast %cst_99 : f32 to vector<2x32xf32>
    %318 = arith.cmpf ogt, %316, %317 : vector<2x32xf32>
    %319 = arith.extui %318 : vector<2x32xi1> to vector<2x32xi32>
    %320 = arith.sitofp %319 : vector<2x32xi32> to vector<2x32xf32>
    %321 = arith.truncf %320 : vector<2x32xf32> to vector<2x32xbf16>
    %cst_100 = arith.constant dense<0.000000e+00> : vector<2x36xf32>
    %322 = tpu.matmul %321, %3, %cst_100 {dimension_numbers = #tpu.dot_dimension_numbers<[1], [0], [0], [1], [0, 0, 1, 1], [], []>} : vector<2x32xbf16>, vector<32x36xbf16>, vector<2x36xf32> -> vector<2x36xf32>
    %323 = vector.extract_strided_slice %322 {offsets = [0, 0], sizes = [2, 32], strides = [1, 1]} : vector<2x36xf32> to vector<2x32xf32>
    %324 = vector.extract_strided_slice %322 {offsets = [0, 32], sizes = [2, 4], strides = [1, 1]} : vector<2x36xf32> to vector<2x4xf32>
    %325 = arith.addf %324, %19 : vector<2x4xf32>
    %326 = arith.mulf %13, %288 : vector<2x4xf32>
    %327 = arith.mulf %16, %301 : vector<2x4xf32>
    %328 = arith.addf %326, %327 : vector<2x4xf32>
    %cst_101 = arith.constant 1.800000e+00 : f32
    %329 = vector.broadcast %cst_101 : f32 to vector<2x4xf32>
    %330 = arith.mulf %329, %328 : vector<2x4xf32>
    %cst_102 = arith.constant 0.00999999977 : f32
    %331 = vector.broadcast %cst_102 : f32 to vector<2x4xf32>
    %332 = arith.addf %331, %330 : vector<2x4xf32>
    %333 = arith.mulf %296, %10 : vector<2x4xf32>
    %334 = arith.addf %333, %325 : vector<2x4xf32>
    %335 = arith.mulf %332, %301 : vector<2x4xf32>
    %336 = arith.subf %334, %335 : vector<2x4xf32>
    %337 = arith.subf %336, %332 : vector<2x4xf32>
    %cst_103 = arith.constant 0.000000e+00 : f32
    %338 = vector.broadcast %cst_103 : f32 to vector<2x4xf32>
    %339 = arith.cmpf ogt, %337, %338 : vector<2x4xf32>
    %340 = arith.extui %339 : vector<2x4xi1> to vector<2x4xi32>
    %341 = arith.sitofp %340 : vector<2x4xi32> to vector<2x4xf32>
    %342 = arith.index_cast %c7_i32 : i32 to index
    %c0_104 = arith.constant 0 : index
    %c0_105 = arith.constant 0 : index
    %343 = vector.load %arg8[%342, %c0_104, %c0_105] : memref<8x2x4xf32, #tpu.memory_space<vmem>>, vector<1x2x4xf32>
    %344 = vector.shape_cast %343 : vector<1x2x4xf32> to vector<2x4xf32>
    %345 = vector.shape_cast %336 : vector<2x4xf32> to vector<1x2x4xf32>
    tpu.vector_store %arg8[%342, %c0_104, %c0_105], %345 {strides = array<i32>} : memref<8x2x4xf32, #tpu.memory_space<vmem>>, vector<1x2x4xf32>,
    %c8_i32 = arith.constant 8 : i32
    %c0_106 = arith.constant 0 : index
    %c0_107 = arith.constant 0 : index
    %346 = vector.load %arg9[%c0_106, %c0_107] : memref<2x32xf32, #tpu.memory_space<vmem>>, vector<2x32xf32>
    tpu.vector_store %arg9[%c0_106, %c0_107], %314 {strides = array<i32>} : memref<2x32xf32, #tpu.memory_space<vmem>>, vector<2x32xf32>,
    %c0_108 = arith.constant 0 : index
    %c0_109 = arith.constant 0 : index
    %347 = vector.load %arg10[%c0_108, %c0_109] : memref<2x32xf32, #tpu.memory_space<vmem>>, vector<2x32xf32>
    tpu.vector_store %arg10[%c0_108, %c0_109], %320 {strides = array<i32>} : memref<2x32xf32, #tpu.memory_space<vmem>>, vector<2x32xf32>,
    %c0_110 = arith.constant 0 : index
    %c0_111 = arith.constant 0 : index
    %348 = vector.load %arg11[%c0_110, %c0_111] : memref<2x32xf32, #tpu.memory_space<vmem>>, vector<2x32xf32>
    tpu.vector_store %arg11[%c0_110, %c0_111], %323 {strides = array<i32>} : memref<2x32xf32, #tpu.memory_space<vmem>>, vector<2x32xf32>,
    %c0_112 = arith.constant 0 : index
    %c0_113 = arith.constant 0 : index
    %349 = vector.load %arg12[%c0_112, %c0_113] : memref<2x4xf32, #tpu.memory_space<vmem>>, vector<2x4xf32>
    tpu.vector_store %arg12[%c0_112, %c0_113], %336 {strides = array<i32>} : memref<2x4xf32, #tpu.memory_space<vmem>>, vector<2x4xf32>,
    %c0_114 = arith.constant 0 : index
    %c0_115 = arith.constant 0 : index
    %350 = vector.load %arg13[%c0_114, %c0_115] : memref<2x4xf32, #tpu.memory_space<vmem>>, vector<2x4xf32>
    tpu.vector_store %arg13[%c0_114, %c0_115], %341 {strides = array<i32>} : memref<2x4xf32, #tpu.memory_space<vmem>>, vector<2x4xf32>,
    %c0_116 = arith.constant 0 : index
    %c0_117 = arith.constant 0 : index
    %351 = vector.load %arg14[%c0_116, %c0_117] : memref<2x4xf32, #tpu.memory_space<vmem>>, vector<2x4xf32>
    tpu.vector_store %arg14[%c0_116, %c0_117], %328 {strides = array<i32>} : memref<2x4xf32, #tpu.memory_space<vmem>>, vector<2x4xf32>,
    %c0_118 = arith.constant 0 : index
    %c0_119 = arith.constant 0 : index
    %c0_120 = arith.constant 0 : index
    %352 = vector.load %arg8[%c0_118, %c0_119, %c0_120] : memref<8x2x4xf32, #tpu.memory_space<vmem>>, vector<8x2x4xf32>
    %cst_121 = arith.constant dense<0xFF800000> : vector<8x2xf32>
    %353 = vector.multi_reduction <maximumf>, %352, %cst_121 [2] : vector<8x2x4xf32> to vector<8x2xf32>
    %354 = vector.shape_cast %353 : vector<8x2xf32> to vector<8x2x1xf32>
    %355 = vector.broadcast %354 : vector<8x2x1xf32> to vector<8x2x4xf32>
    %356 = arith.subf %352, %355 : vector<8x2x4xf32>
    %357 = math.exp %356 : vector<8x2x4xf32>
    %cst_122 = arith.constant dense<0.000000e+00> : vector<8x2xf32>
    %358 = vector.multi_reduction <add>, %357, %cst_122 [2] : vector<8x2x4xf32> to vector<8x2xf32>
    %359 = vector.shape_cast %358 : vector<8x2xf32> to vector<8x2x1xf32>
    %360 = math.log %359 : vector<8x2x1xf32>
    %361 = arith.addf %354, %360 : vector<8x2x1xf32>
    %362 = vector.broadcast %361 : vector<8x2x1xf32> to vector<8x2x4xf32>
    %363 = arith.subf %352, %362 : vector<8x2x4xf32>
    %c0_123 = arith.constant 0 : index
    %c0_124 = arith.constant 0 : index
    %c0_125 = arith.constant 0 : index
    %364 = vector.load %arg8[%c0_123, %c0_124, %c0_125] : memref<8x2x4xf32, #tpu.memory_space<vmem>>, vector<8x2x4xf32>
    tpu.vector_store %arg8[%c0_123, %c0_124, %c0_125], %363 {strides = array<i32>} : memref<8x2x4xf32, #tpu.memory_space<vmem>>, vector<8x2x4xf32>,
    return
  }
  func.func @transform_0(%arg0: i32) -> (i32, i32, i32) {
    %c0_i32 = arith.constant 0 : i32
    %c0_i32_0 = arith.constant 0 : i32
    %c0_i32_1 = arith.constant 0 : i32
    return %arg0, %c0_i32, %c0_i32_0 : i32, i32, i32
  }
  func.func @transform_1(%arg0: i32) -> (i32, i32) {
    %c0_i32 = arith.constant 0 : i32
    %c0_i32_0 = arith.constant 0 : i32
    %c0_i32_1 = arith.constant 0 : i32
    return %c0_i32, %c0_i32_0 : i32, i32
  }
  func.func @transform_2(%arg0: i32) -> (i32, i32) {
    %c0_i32 = arith.constant 0 : i32
    %c0_i32_0 = arith.constant 0 : i32
    %c0_i32_1 = arith.constant 0 : i32
    return %c0_i32, %c0_i32_0 : i32, i32
  }
  func.func @transform_3(%arg0: i32) -> (i32, i32) {
    %c0_i32 = arith.constant 0 : i32
    %c0_i32_0 = arith.constant 0 : i32
    %c0_i32_1 = arith.constant 0 : i32
    return %c0_i32, %c0_i32_0 : i32, i32
  }
  func.func @transform_4(%arg0: i32) -> (i32, i32) {
    %c0_i32 = arith.constant 0 : i32
    %c0_i32_0 = arith.constant 0 : i32
    %c0_i32_1 = arith.constant 0 : i32
    return %c0_i32, %c0_i32_0 : i32, i32
  }
  func.func @transform_5(%arg0: i32) -> (i32, i32) {
    %c0_i32 = arith.constant 0 : i32
    %c0_i32_0 = arith.constant 0 : i32
    %c0_i32_1 = arith.constant 0 : i32
    return %c0_i32, %c0_i32_0 : i32, i32
  }
  func.func @transform_6(%arg0: i32) -> (i32, i32) {
    %c0_i32 = arith.constant 0 : i32
    %c0_i32_0 = arith.constant 0 : i32
    %c0_i32_1 = arith.constant 0 : i32
    return %c0_i32, %c0_i32_0 : i32, i32
  }
  func.func @transform_7(%arg0: i32) -> (i32, i32, i32) {
    %c0_i32 = arith.constant 0 : i32
    %c0_i32_0 = arith.constant 0 : i32
    %c0_i32_1 = arith.constant 0 : i32
    return %arg0, %c0_i32, %c0_i32_0 : i32, i32, i32
  }
}

</mosaic_0001>

<llo_original>
// kernel: tpu_custom_call.1
$region0: #{tpu_custom_call.1}
  #allocation0 [shape = 'u32[]', space=smem, size = 0x4, offset = 0x4, fixed_abs, tag = 'smem constant byte address 0x4 - core index']
  #allocation1 [shape = 'u32[144,128]{1,0:T(1,128)}', space=vmem, size = 0x12000, scoped, tag = 'internal scratch']
  #allocation2 [shape = 'f32[2,32]{1,0:T(2,128)}', space=vmem, size = 0x400, scoped, tag = 'scratch operand']
  #allocation3 [shape = 'f32[2,32]{1,0:T(2,128)}', space=vmem, size = 0x400, scoped, tag = 'scratch operand']
  #allocation4 [shape = 'f32[2,32]{1,0:T(2,128)}', space=vmem, size = 0x400, scoped, tag = 'scratch operand']
  #allocation5 [shape = 'f32[2,4]{1,0:T(2,128)}', space=vmem, size = 0x400, scoped, tag = 'scratch operand']
  #allocation6 [shape = 'f32[2,4]{1,0:T(2,128)}', space=vmem, size = 0x400, scoped, tag = 'scratch operand']
  #allocation7 [shape = 'f32[2,4]{1,0:T(2,128)}', space=vmem, size = 0x400, scoped, tag = 'scratch operand']
  %s0 = inlined_call_operand.hbm [shape: f32[16,2,32], index: 0, kind: input, shape index: {}]
  %s1 = inlined_call_operand.hbm [shape: bf16[32,36], index: 1, kind: input, shape index: {}]
  %s2 = inlined_call_operand.vmem [shape: f32[1,32], index: 2, kind: input, shape index: {}]
  %s3 = inlined_call_operand.vmem [shape: f32[4,4], index: 3, kind: input, shape index: {}]
  %s4 = inlined_call_operand.vmem [shape: f32[2,32], index: 4, kind: input, shape index: {}]
  %s5 = inlined_call_operand.vmem [shape: f32[2,4], index: 5, kind: input, shape index: {}]
  %s6 = inlined_call_operand.vmem [shape: f32[2,32], index: 6, kind: input, shape index: {}]
  %s7 = inlined_call_operand.vmem [shape: f32[16,2,4], index: 7, kind: output, shape index: {}]
  %s8 = sld [smem:[#allocation0]]
  $region73: #{tpu_custom_call.1} parent=0
    _
  %s10 = ssub.s32 1, %s8
  %s11 = scalar_select 0, %s10, %s8
  $region1: #{tpu_custom_call.1} parent=0
    #allocation8 [shape = 'u8[16384]{0}', space=vmem, size = 0x4000, scoped, tag = 'input window, operand 0']
    #allocation9 [shape = 's32[2]{0}', space=sflag, size = 0x8, scoped, tag = 'scoped memory for tpu_custom_call.1']
    #allocation10 [shape = 'u8[8192]{0}', space=vmem, size = 0x2000, scoped, tag = 'input window, operand 1, single buffered']
    #allocation11 [shape = 's32[1]{0}', space=sflag, size = 0x4, scoped, tag = 'scoped memory for tpu_custom_call.1']
    %12 = vsyncpa [#allocation9], 0
    %s13 = scalar_lea.sflag [#allocation9], 1
    %14 = vsyncpa %s13, 0
    %15 = vsyncpa [#allocation11], 0
    loop: start=0, step=1, limit=4
    $region2: #{tpu_custom_call.1} parent=1 // loop_pre_header
      _
    $region3: #{tpu_custom_call.1} parent=1 // loop_header
      %s17 = sphi 0, %s21
      %p18 = scmp.ge.s32.totalorder %s17, 4
      %s27 = sphi 0, %s29
      %s30 = sphi 0, %s27
      %s31 = sphi 0, %s30
      %s47 = sphi 0, %s31
      %s51 = sphi 0, %s51
      %s53 = sphi 0, %s51
      %s54 = sphi 0, %s53
      %s68 = sphi 0, %s54
      %s72 = sphi 0, %s72
      %s74 = sphi 0, %s72
      %s75 = sphi 0, %s74
      %s89 = sphi 0, %s75
      %s93 = sphi 0, %s93
      %s95 = sphi 0, %s93
      %s96 = sphi 0, %s95
      %s110 = sphi 0, %s96
      %s114 = sphi 0, %s114
      %s116 = sphi 0, %s114
      %s117 = sphi 0, %s116
      %s131 = sphi 0, %s117
      %s135 = sphi 0, %s135
      %s137 = sphi 0, %s135
      %s138 = sphi 0, %s137
      %s152 = sphi 0, %s138
      %s156 = sphi 0, %s156
      %s158 = sphi 0, %s156
      %s159 = sphi 0, %s158
      %s173 = sphi 0, %s159
      %s179 = sphi 0, %s181
      %s182 = sphi 0, %s179
      %s183 = sphi 0, %s182
      %s199 = sphi 0, %s183
    $region4: #{tpu_custom_call.1} parent=1 // loop_header_branch
      %20 = sbr.rel (%p18) target = $region8
    $region5: #{tpu_custom_call.1} parent=1 // loop_body
      %s22 = ssub.s32 %s17, 1
      %s23 = ssub.s32 %s17, 2
      %s24 = sadd.s32 %s17, 1
      %s25 = ssub.s32 %s17, %s24
      %p26 = scmp.eq.s32.totalorder %s25, 0
      %s28 = sadd.s32 %s27, 1
      %s29 = scalar_select %p26, %s27, %s28
      %p32 = pneg %p26
      %p33 = scmp.eq.s32.totalorder %s17, 1
      %p34 = por %p32, %p33
      %p35 = scmp.ne.s32.totalorder %s27, %s30
      %p36 = scmp.eq.s32.totalorder %s17, 0
      %p37 = por %p35, %p36
      %p38 = scmp.ne.s32.totalorder %s27, %s30
      %p39 = scmp.eq.s32.totalorder %s22, 1
      %p40 = por %p38, %p39
      %p41 = scmp.ne.s32.totalorder %s30, %s31
      %p42 = scmp.eq.s32.totalorder %s22, 0
      %p43 = por %p41, %p42
      %p44 = scmp.ne.s32.totalorder %s30, %s31
      %p45 = scmp.eq.s32.totalorder %s23, 1
      %p46 = por %p44, %p45
      %p48 = scmp.ne.s32.totalorder %s31, %s47
      %p49 = scmp.eq.s32.totalorder %s23, 0
      %p50 = por %p48, %p49
      %s52 = sadd.s32 %s51, 1
      %p55 = scmp.eq.s32.totalorder %s17, 1
      %p56 = scmp.ne.s32.totalorder %s51, %s53
      %p57 = scmp.eq.s32.totalorder %s17, 0
      %p58 = por %p56, %p57
      %p59 = scmp.ne.s32.totalorder %s51, %s53
      %p60 = scmp.eq.s32.totalorder %s22, 1
      %p61 = por %p59, %p60
      %p62 = scmp.ne.s32.totalorder %s53, %s54
      %p63 = scmp.eq.s32.totalorder %s22, 0
      %p64 = por %p62, %p63
      %p65 = scmp.ne.s32.totalorder %s53, %s54
      %p66 = scmp.eq.s32.totalorder %s23, 1
      %p67 = por %p65, %p66
      %p69 = scmp.ne.s32.totalorder %s54, %s68
      %p70 = scmp.eq.s32.totalorder %s23, 0
      %p71 = por %p69, %p70
      %s73 = sadd.s32 %s72, 1
      %p76 = scmp.eq.s32.totalorder %s17, 1
      %p77 = scmp.ne.s32.totalorder %s72, %s74
      %p78 = scmp.eq.s32.totalorder %s17, 0
      %p79 = por %p77, %p78
      %p80 = scmp.ne.s32.totalorder %s72, %s74
      %p81 = scmp.eq.s32.totalorder %s22, 1
      %p82 = por %p80, %p81
      %p83 = scmp.ne.s32.totalorder %s74, %s75
      %p84 = scmp.eq.s32.totalorder %s22, 0
      %p85 = por %p83, %p84
      %p86 = scmp.ne.s32.totalorder %s74, %s75
      %p87 = scmp.eq.s32.totalorder %s23, 1
      %p88 = por %p86, %p87
      %p90 = scmp.ne.s32.totalorder %s75, %s89
      %p91 = scmp.eq.s32.totalorder %s23, 0
      %p92 = por %p90, %p91
      %s94 = sadd.s32 %s93, 1
      %p97 = scmp.eq.s32.totalorder %s17, 1
      %p98 = scmp.ne.s32.totalorder %s93, %s95
      %p99 = scmp.eq.s32.totalorder %s17, 0
      %p100 = por %p98, %p99
      %p101 = scmp.ne.s32.totalorder %s93, %s95
      %p102 = scmp.eq.s32.totalorder %s22, 1
      %p103 = por %p101, %p102
      %p104 = scmp.ne.s32.totalorder %s95, %s96
      %p105 = scmp.eq.s32.totalorder %s22, 0
      %p106 = por %p104, %p105
      %p107 = scmp.ne.s32.totalorder %s95, %s96
      %p108 = scmp.eq.s32.totalorder %s23, 1
      %p109 = por %p107, %p108
      %p111 = scmp.ne.s32.totalorder %s96, %s110
      %p112 = scmp.eq.s32.totalorder %s23, 0
      %p113 = por %p111, %p112
      %s115 = sadd.s32 %s114, 1
      %p118 = scmp.eq.s32.totalorder %s17, 1
      %p119 = scmp.ne.s32.totalorder %s114, %s116
      %p120 = scmp.eq.s32.totalorder %s17, 0
      %p121 = por %p119, %p120
      %p122 = scmp.ne.s32.totalorder %s114, %s116
      %p123 = scmp.eq.s32.totalorder %s22, 1
      %p124 = por %p122, %p123
      %p125 = scmp.ne.s32.totalorder %s116, %s117
      %p126 = scmp.eq.s32.totalorder %s22, 0
      %p127 = por %p125, %p126
      %p128 = scmp.ne.s32.totalorder %s116, %s117
      %p129 = scmp.eq.s32.totalorder %s23, 1
      %p130 = por %p128, %p129
      %p132 = scmp.ne.s32.totalorder %s117, %s131
      %p133 = scmp.eq.s32.totalorder %s23, 0
      %p134 = por %p132, %p133
      %s136 = sadd.s32 %s135, 1
      %p139 = scmp.eq.s32.totalorder %s17, 1
      %p140 = scmp.ne.s32.totalorder %s135, %s137
      %p141 = scmp.eq.s32.totalorder %s17, 0
      %p142 = por %p140, %p141
      %p143 = scmp.ne.s32.totalorder %s135, %s137
      %p144 = scmp.eq.s32.totalorder %s22, 1
      %p145 = por %p143, %p144
      %p146 = scmp.ne.s32.totalorder %s137, %s138
      %p147 = scmp.eq.s32.totalorder %s22, 0
      %p148 = por %p146, %p147
      %p149 = scmp.ne.s32.totalorder %s137, %s138
      %p150 = scmp.eq.s32.totalorder %s23, 1
      %p151 = por %p149, %p150
      %p153 = scmp.ne.s32.totalorder %s138, %s152
      %p154 = scmp.eq.s32.totalorder %s23, 0
      %p155 = por %p153, %p154
      %s157 = sadd.s32 %s156, 1
      %p160 = scmp.eq.s32.totalorder %s17, 1
      %p161 = scmp.ne.s32.totalorder %s156, %s158
      %p162 = scmp.eq.s32.totalorder %s17, 0
      %p163 = por %p161, %p162
      %p164 = scmp.ne.s32.totalorder %s156, %s158
      %p165 = scmp.eq.s32.totalorder %s22, 1
      %p166 = por %p164, %p165
      %p167 = scmp.ne.s32.totalorder %s158, %s159
      %p168 = scmp.eq.s32.totalorder %s22, 0
      %p169 = por %p167, %p168
      %p170 = scmp.ne.s32.totalorder %s158, %s159
      %p171 = scmp.eq.s32.totalorder %s23, 1
      %p172 = por %p170, %p171
      %p174 = scmp.ne.s32.totalorder %s159, %s173
      %p175 = scmp.eq.s32.totalorder %s23, 0
      %p176 = por %p174, %p175
      %s177 = ssub.s32 %s17, %s24
      %p178 = scmp.eq.s32.totalorder %s177, 0
      %s180 = sadd.s32 %s179, 1
      %s181 = scalar_select %p178, %s179, %s180
      %p184 = pneg %p178
      %p185 = scmp.eq.s32.totalorder %s17, 1
      %p186 = por %p184, %p185
      %p187 = scmp.ne.s32.totalorder %s179, %s182
      %p188 = scmp.eq.s32.totalorder %s17, 0
      %p189 = por %p187, %p188
      %p190 = scmp.ne.s32.totalorder %s179, %s182
      %p191 = scmp.eq.s32.totalorder %s22, 1
      %p192 = por %p190, %p191
      %p193 = scmp.ne.s32.totalorder %s182, %s183
      %p194 = scmp.eq.s32.totalorder %s22, 0
      %p195 = por %p193, %p194
      %p196 = scmp.ne.s32.totalorder %s182, %s183
      %p197 = scmp.eq.s32.totalorder %s23, 1
      %p198 = por %p196, %p197
      %p200 = scmp.ne.s32.totalorder %s183, %s199
      %p201 = scmp.eq.s32.totalorder %s23, 0
      %p202 = por %p200, %p201
      %p203 = scmp.le.s32.totalorder 1, %s17
      %p204 = scmp.lt.s32.totalorder %s17, 3
      %p205 = pnand %p203, %p204
      %p206 = pneg %p205
      // Predicated region
      $region9: #{tpu_custom_call.1} parent=5 // pred_check
        _
      $region10: #{tpu_custom_call.1} parent=5 // pred_check_branch
        %208 = sbr.rel (%p205) target = $region12
      $region11: #{tpu_custom_call.1} parent=5 // pred_region
        %s209 = ssub.s32 %s17, 1
        // Predicated region
        $region13: #{tpu_custom_call.1} parent=11 // pred_check
          %p210 = pneg %p64
        $region14: #{tpu_custom_call.1} parent=11 // pred_check_branch
          %212 = sbr.rel (%p210) target = $region16
        $region15: #{tpu_custom_call.1} parent=11 // pred_region
          %s214 = ssub.s32 256, 256
          %215 = vsyncadd [#allocation11], %s214
          %s216 = sshll.u32 [#allocation10], 4
          %s217 = int_to_ptr.vmem [resolvable:$true] %s216
          %222 = dma.hbm_to_vmem [thread:$0]  %s1, 256, %s217, [#allocation11], 64, 64, 4
        $region16: #{tpu_custom_call.1} parent=11 // pred_fallthru
          _
        // Predicated region
        $region17: #{tpu_custom_call.1} parent=11 // pred_check
          %p223 = pneg %p85
        $region18: #{tpu_custom_call.1} parent=11 // pred_check_branch
          %225 = sbr.rel (%p223) target = $region20
        $region19: #{tpu_custom_call.1} parent=11 // pred_region
          _
        $region20: #{tpu_custom_call.1} parent=11 // pred_fallthru
          _
        // Predicated region
        $region21: #{tpu_custom_call.1} parent=11 // pred_check
          %p226 = pneg %p106
        $region22: #{tpu_custom_call.1} parent=11 // pred_check_branch
          %228 = sbr.rel (%p226) target = $region24
        $region23: #{tpu_custom_call.1} parent=11 // pred_region
          _
        $region24: #{tpu_custom_call.1} parent=11 // pred_fallthru
          _
        // Predicated region
        $region25: #{tpu_custom_call.1} parent=11 // pred_check
          %p229 = pneg %p127
        $region26: #{tpu_custom_call.1} parent=11 // pred_check_branch
          %231 = sbr.rel (%p229) target = $region28
        $region27: #{tpu_custom_call.1} parent=11 // pred_region
          _
        $region28: #{tpu_custom_call.1} parent=11 // pred_fallthru
          _
        // Predicated region
        $region29: #{tpu_custom_call.1} parent=11 // pred_check
          %p232 = pneg %p148
        $region30: #{tpu_custom_call.1} parent=11 // pred_check_branch
          %234 = sbr.rel (%p232) target = $region32
        $region31: #{tpu_custom_call.1} parent=11 // pred_region
          _
        $region32: #{tpu_custom_call.1} parent=11 // pred_fallthru
          _
        // Predicated region
        $region33: #{tpu_custom_call.1} parent=11 // pred_check
          %p235 = pneg %p169
        $region34: #{tpu_custom_call.1} parent=11 // pred_check_branch
          %237 = sbr.rel (%p235) target = $region36
        $region35: #{tpu_custom_call.1} parent=11 // pred_region
          _
        $region36: #{tpu_custom_call.1} parent=11 // pred_fallthru
          _
      $region12: #{tpu_custom_call.1} parent=5 // pred_fallthru
        _
      %p238 = scmp.lt.s32.totalorder %s17, 2
      // Predicated region
      $region37: #{tpu_custom_call.1} parent=5 // pred_check
        %p239 = pneg %p238
      $region38: #{tpu_custom_call.1} parent=5 // pred_check_branch
        %241 = sbr.rel (%p239) target = $region40
      $region39: #{tpu_custom_call.1} parent=5 // pred_region
        // Predicated region
        $region41: #{tpu_custom_call.1} parent=39 // pred_check
          %p242 = pneg %p37
        $region42: #{tpu_custom_call.1} parent=39 // pred_check_branch
          %244 = sbr.rel (%p242) target = $region44
        $region43: #{tpu_custom_call.1} parent=39 // pred_region
          %s245 = sand.u32 %s27, 1
          %s246 = scalar_lea.sflag [#allocation9], %s245
          %s247 = sand.u32 %s27, 1
          %s248 = smul.addr %s247, 16
          %s249 = scalar_lea.vmem [#allocation8], %s248
          %s250 = smul.u32 8, %s17
          %s252 = ssub.s32 256, 256
          %253 = vsyncadd %s246, %s252
          %s254 = smul.addr %s250, 32
          %s255 = scalar_lea.hbm %s0, %s254
          %s256 = sshll.u32 %s249, 4
          %s257 = int_to_ptr.vmem [resolvable:$true] %s256
          %262 = dma.hbm_to_vmem [thread:$0]  %s255, 256, %s257, %s246, 32, 32, 2
        $region44: #{tpu_custom_call.1} parent=39 // pred_fallthru
          _
      $region40: #{tpu_custom_call.1} parent=5 // pred_fallthru
        _
      %p263 = scmp.le.s32.totalorder 1, %s17
      %p264 = scmp.lt.s32.totalorder %s17, 3
      %p265 = pnand %p263, %p264
      %p266 = pneg %p265
      // Predicated region
      $region45: #{tpu_custom_call.1} parent=5 // pred_check
        _
      $region46: #{tpu_custom_call.1} parent=5 // pred_check_branch
        %268 = sbr.rel (%p265) target = $region48
      $region47: #{tpu_custom_call.1} parent=5 // pred_region
        %s269 = ssub.s32 %s17, 1
        %s270 = sand.u32 %s30, 1
        %s271 = scalar_lea.sflag [#allocation9], %s270
        %s272 = sand.u32 %s30, 1
        %s273 = smul.addr %s272, 16
        %s274 = scalar_lea.vmem [#allocation8], %s273
        // Predicated region
        $region49: #{tpu_custom_call.1} parent=47 // pred_check
          %p275 = pneg %p43
        $region50: #{tpu_custom_call.1} parent=47 // pred_check_branch
          %277 = sbr.rel (%p275) target = $region52
        $region51: #{tpu_custom_call.1} parent=47 // pred_region
          %278 = dma.done %s271, 256
        $region52: #{tpu_custom_call.1} parent=47 // pred_fallthru
          _
        // Predicated region
        $region53: #{tpu_custom_call.1} parent=47 // pred_check
          %p279 = pneg %p64
        $region54: #{tpu_custom_call.1} parent=47 // pred_check_branch
          %281 = sbr.rel (%p279) target = $region56
        $region55: #{tpu_custom_call.1} parent=47 // pred_region
          %282 = dma.done [#allocation11], 256
        $region56: #{tpu_custom_call.1} parent=47 // pred_fallthru
          _
        %s283 = sand.u32 %s30, 1
        %s284 = scalar_lea.sflag [#allocation9], %s283
        %s285 = sand.u32 %s30, 1
        %s286 = smul.addr %s285, 16
        %s287 = scalar_lea.vmem [#allocation8], %s286
        %p288 = pneg %p43
        %p289 = pneg %p40
        %p290 = pneg %p64
        %p291 = pneg %p61
        %p292 = pneg %p85
        %p293 = pneg %p82
        %p294 = pneg %p106
        %p295 = pneg %p103
        %p296 = pneg %p127
        %p297 = pneg %p124
        %p298 = pneg %p148
        %p299 = pneg %p145
        %p300 = pneg %p169
        %p301 = pneg %p166
        %p302 = pneg %p195
        %p303 = pneg %p192
        %s304 = smul.u32 8, %s22
        %p305 = scmp.lt.s32.totalorder %s304, 15
        %s306 = scalar_select %p305, %s304, 15
        %s307 = smul.addr %s306, 2
        %s308 = scalar_lea.vmem %s7, %s307
        %s309 = smul.u32 8, %s22
        %s310 = smul.u32 8, %s22
        %p311 = scmp.lt.s32.totalorder %s310, 15
        %s312 = scalar_select %p311, %s310, 15
        %s313 = smul.addr %s312, 2
        %s314 = scalar_lea.vmem %s7, %s313
        %s315 = smul.u32 8, %s22
        %p317 = scmp.eq.s32.totalorder %s22, 0
        // Predicated region
        $region57: #{tpu_custom_call.1} parent=47 // pred_check
          %p318 = pneg %p317
        $region58: #{tpu_custom_call.1} parent=47 // pred_check_branch
          %320 = sbr.rel (%p318) target = $region60
        $region59: #{tpu_custom_call.1} parent=47 // pred_region
          %v321 = vld [vmem:[%s4] sm:$0x3]
          %vm322 = vcmask 254976
          %323 = vst.msk [vmem:[#allocation2] sm:$0x3] %vm322, %v321
          %v324 = vld [vmem:[%s4] sm:$0x3]
          %325 = vst.msk [vmem:[#allocation3] sm:$0x3] %vm322, %v324
          %v326 = vld [vmem:[%s6] sm:$0x3]
          %327 = vst.msk [vmem:[#allocation4] sm:$0x3] %vm322, %v326
          %v328 = vld [vmem:[%s5] sm:$0x3]
          %vm329 = vcmask 25600
          %330 = vst.msk [vmem:[#allocation5] sm:$0x3] %vm329, %v328
          %v331 = vld [vmem:[%s5] sm:$0x3]
          %332 = vst.msk [vmem:[#allocation6] sm:$0x3] %vm329, %v331
          %333 = vst.msk [vmem:[#allocation7] sm:$0x3] %vm329, 0.01
        $region60: #{tpu_custom_call.1} parent=47 // pred_fallthru
          _
        %v334 = vld [vmem:[#allocation10] sm:$0xf]
        %v335 = vld [vmem:[#allocation10 + $0x4] sm:$0xf]
        %v336 = vld [vmem:[#allocation10 + $0x8] sm:$0xf]
        %v337 = vld [vmem:[#allocation10 + $0xc] sm:$0xf]
        %v338 = vld [vmem:[%s2] sm:$0x1]
        %v340 = vlaneseq
        %v341 = vshrl.u32 %v340, 7
        %v342 = vsub.s32 0, %v341
        %v343 = vrot.slane %v338, %v342
        %v345 = vld [vmem:[%s3] sm:$0xf]
        %v346 = vlaneseq
        %v347 = vshrl.u32 %v346, 7
        %v348 = vsub.s32 0, %v347
        %v349 = vrot.slane %v345, %v348
        %v350 = vlaneseq
        %v351 = vshrl.u32 %v350, 7
        %v352 = vsub.s32 1, %v351
        %v353 = vrot.slane %v345, %v352
        %v354 = vlaneseq
        %v355 = vshrl.u32 %v354, 7
        %v356 = vsub.s32 2, %v355
        %v357 = vrot.slane %v345, %v356
        %v358 = vlaneseq
        %v359 = vshrl.u32 %v358, 7
        %v360 = vsub.s32 3, %v359
        %v361 = vrot.slane %v345, %v360
        %v362 = vld [vmem:[#allocation2] sm:$0x3]
        %v363 = vld [vmem:[#allocation3] sm:$0x3]
        %v364 = vld [vmem:[#allocation4] sm:$0x3]
        %v365 = vld [vmem:[#allocation5] sm:$0x3]
        %v366 = vld [vmem:[#allocation6] sm:$0x3]
        %v367 = vld [vmem:[#allocation7] sm:$0x3]
        %v368 = vmul.f32 %v362, %v343
        %v369 = vld [vmem:[%s274] sm:$0x3]
        %v370 = vadd.f32 %v368, %v369
        %v371 = vadd.f32 %v370, %v364
        %v372 = vmul.f32 %v363, 0.01
        %v373 = vsub.f32 %v371, %v372
        %v374 = vsub.f32 %v373, 0.01
        %vm375 = vcmp.gt.f32.partialorder %v374, 0.0
        %v376 = vsel %vm375, 1, 0
        %v377 = vcvt.s32.f32 %v376
        %v378 = vpack.c.bf16 %v377, %v377
        %v383 = vunpack.c.l.b16 %v334
        %v384 = vunpack.c.l.b16 %v335
        %v385 = vunpack.c.l.b16 %v336
        %v386 = vunpack.c.l.b16 %v337
        %v387 = vpack.c.b16 %v384, %v383
        %v388 = vpack.c.b16 %v386, %v385
        %vm391 = vcmask 261120
        %v393 = vsel %vm391, %v378, 0
        %395 = vmatprep.subr.bf16.mxu0 0
        %396 = vmatpush1.bf16.msra.mxu0 %v387
        %397 = vmatprep.subr.bf16.mxu0 0
        %398 = vmatpush1.bf16.msra.mxu0 %v388
        %399 = vmatprep.subr.bf16.mxu0 0
        %400 = vmatpush1.bf16.msra.mxu0 0
        %401 = vmatprep.subr.bf16.mxu0 0
        %402 = vmatpush1.bf16.msra.mxu0 0
        %403 = vmatprep.subr.bf16.mxu0 0
        %404 = vmatpush1.bf16.msra.mxu0 0
        %405 = vmatprep.subr.bf16.mxu0 0
        %406 = vmatpush1.bf16.msra.mxu0 0
        %407 = vmatprep.subr.bf16.mxu0 0
        %408 = vmatpush1.bf16.msra.mxu0 0
        %409 = vmatprep.subr.bf16.mxu0 0
        %410 = vmatpush1.bf16.msra.mxu0 0
        %411 = vmatprep.subr.bf16.mxu0 0
        %412 = vmatpush1.bf16.msra.mxu0 0
        %413 = vmatprep.subr.bf16.mxu0 0
        %414 = vmatpush1.bf16.msra.mxu0 0
        %415 = vmatprep.subr.bf16.mxu0 0
        %416 = vmatpush1.bf16.msra.mxu0 0
        %417 = vmatprep.subr.bf16.mxu0 0
        %418 = vmatpush1.bf16.msra.mxu0 0
        %419 = vmatprep.subr.bf16.mxu0 0
        %420 = vmatpush1.bf16.msra.mxu0 0
        %421 = vmatprep.subr.bf16.mxu0 0
        %422 = vmatpush1.bf16.msra.mxu0 0
        %423 = vmatprep.subr.bf16.mxu0 0
        %424 = vmatpush1.bf16.msra.mxu0 0
        %425 = vmatprep.subr.bf16.mxu0 0
        %426 = vmatpush1.bf16.msra.mxu0 0
        %427 = vmatprep.mubr.bf16.mxu0 0
        %428 = vmatmul.mubr.bf16.gmra.mrb[0].mxu0 %v393
        %v429 = vpop.f32.mrb[0].mxu0
        %v430 = vadd.f32 0.0, %v429
        %v431 = vpop.f32.mrb[0].mxu0
        %v432 = vpop.f32.mrb[0].mxu0
        %v433 = vpop.f32.mrb[0].mxu0
        %434 = vdwg.mxu0
        %436 = vrot.lane.b32.xlu0 %v361, 32
        %v437 = vpop.permute.xlu0 %436
        %v439 = vadd.f32 %v430, %v437
        %v440 = vmul.f32 %v353, %v367
        %v441 = vmul.f32 %v357, %v366
        %v442 = vadd.f32 %v440, %v441
        %v443 = vmul.f32 %v442, 1.8
        %v444 = vadd.f32 %v443, 0.01
        %v445 = vmul.f32 %v365, %v349
        %447 = vrot.lane.b32.xlu0 %v439, 96
        %v448 = vpop.permute.xlu0 %447
        %v450 = vadd.f32 %v445, %v448
        %v451 = vmul.f32 %v444, %v366
        %v452 = vsub.f32 %v450, %v451
        %v453 = vsub.f32 %v452, %v444
        %vm454 = vcmp.gt.f32.partialorder %v453, 0.0
        %v455 = vsel %vm454, 1, 0
        %v456 = vcvt.s32.f32 %v455
        %vm457 = vcmask 25600
        %458 = vst.msk [vmem:[%s314] sm:$0x3] %vm457, %v452
        %v459 = vmul.f32 %v373, %v343
        %s460 = scalar_lea.vmem %s274, 2 [#allocation8]
        %v461 = vld [vmem:[%s460] sm:$0x3]
        %v462 = vadd.f32 %v459, %v461
        %v463 = vadd.f32 %v462, %v430
        %v464 = vmul.f32 %v377, 0.01
        %v465 = vsub.f32 %v463, %v464
        %v466 = vsub.f32 %v465, 0.01
        %vm467 = vcmp.gt.f32.partialorder %v466, 0.0
        %v468 = vsel %vm467, 1, 0
        %v469 = vcvt.s32.f32 %v468
        %v470 = vpack.c.bf16 %v469, %v469
        %v472 = vsel %vm391, %v470, 0
        %474 = vmatprep.subr.bf16.mxu0 0
        %475 = vmatpush1.bf16.msra.mxu0 %v387
        %476 = vmatprep.subr.bf16.mxu0 0
        %477 = vmatpush1.bf16.msra.mxu0 %v388
        %478 = vmatprep.subr.bf16.mxu0 0
        %479 = vmatpush1.bf16.msra.mxu0 0
        %480 = vmatprep.subr.bf16.mxu0 0
        %481 = vmatpush1.bf16.msra.mxu0 0
        %482 = vmatprep.subr.bf16.mxu0 0
        %483 = vmatpush1.bf16.msra.mxu0 0
        %484 = vmatprep.subr.bf16.mxu0 0
        %485 = vmatpush1.bf16.msra.mxu0 0
        %486 = vmatprep.subr.bf16.mxu0 0
        %487 = vmatpush1.bf16.msra.mxu0 0
        %488 = vmatprep.subr.bf16.mxu0 0
        %489 = vmatpush1.bf16.msra.mxu0 0
        %490 = vmatprep.subr.bf16.mxu0 0
        %491 = vmatpush1.bf16.msra.mxu0 0
        %492 = vmatprep.subr.bf16.mxu0 0
        %493 = vmatpush1.bf16.msra.mxu0 0
        %494 = vmatprep.subr.bf16.mxu0 0
        %495 = vmatpush1.bf16.msra.mxu0 0
        %496 = vmatprep.subr.bf16.mxu0 0
        %497 = vmatpush1.bf16.msra.mxu0 0
        %498 = vmatprep.subr.bf16.mxu0 0
        %499 = vmatpush1.bf16.msra.mxu0 0
        %500 = vmatprep.subr.bf16.mxu0 0
        %501 = vmatpush1.bf16.msra.mxu0 0
        %502 = vmatprep.subr.bf16.mxu0 0
        %503 = vmatpush1.bf16.msra.mxu0 0
        %504 = vmatprep.subr.bf16.mxu0 0
        %505 = vmatpush1.bf16.msra.mxu0 0
        %506 = vmatprep.mubr.bf16.mxu0 0
        %507 = vmatmul.mubr.bf16.gmra.mrb[0].mxu0 %v472
        %v508 = vpop.f32.mrb[0].mxu0
        %v509 = vadd.f32 0.0, %v508
        %v510 = vpop.f32.mrb[0].mxu0
        %v511 = vpop.f32.mrb[0].mxu0
        %v512 = vpop.f32.mrb[0].mxu0
        %513 = vdwg.mxu0
        %v514 = vadd.f32 %v509, %v437
        %v515 = vmul.f32 %v353, %v442
        %v516 = vmul.f32 %v357, %v456
        %v517 = vadd.f32 %v515, %v516
        %v518 = vmul.f32 %v517, 1.8
        %v519 = vadd.f32 %v518, 0.01
        %v520 = vmul.f32 %v452, %v349
        %522 = vrot.lane.b32.xlu0 %v514, 96
        %v523 = vpop.permute.xlu0 %522
        %v525 = vadd.f32 %v520, %v523
        %v526 = vmul.f32 %v519, %v456
        %v527 = vsub.f32 %v525, %v526
        %v528 = vsub.f32 %v527, %v519
        %vm529 = vcmp.gt.f32.partialorder %v528, 0.0
        %v530 = vsel %vm529, 1, 0
        %v531 = vcvt.s32.f32 %v530
        %s532 = scalar_lea.vmem %s314, 2
        %533 = vst.msk [vmem:[%s532] sm:$0x3] %vm457, %v527
        %v534 = vmul.f32 %v465, %v343
        %s535 = scalar_lea.vmem %s274, 4 [#allocation8]
        %v536 = vld [vmem:[%s535] sm:$0x3]
        %v537 = vadd.f32 %v534, %v536
        %v538 = vadd.f32 %v537, %v509
        %v539 = vmul.f32 %v469, 0.01
        %v540 = vsub.f32 %v538, %v539
        %v541 = vsub.f32 %v540, 0.01
        %vm542 = vcmp.gt.f32.partialorder %v541, 0.0
        %v543 = vsel %vm542, 1, 0
        %v544 = vcvt.s32.f32 %v543
        %v545 = vpack.c.bf16 %v544, %v544
        %v547 = vsel %vm391, %v545, 0
        %549 = vmatprep.subr.bf16.mxu0 0
        %550 = vmatpush1.bf16.msra.mxu0 %v387
        %551 = vmatprep.subr.bf16.mxu0 0
        %552 = vmatpush1.bf16.msra.mxu0 %v388
        %553 = vmatprep.subr.bf16.mxu0 0
        %554 = vmatpush1.bf16.msra.mxu0 0
        %555 = vmatprep.subr.bf16.mxu0 0
        %556 = vmatpush1.bf16.msra.mxu0 0
        %557 = vmatprep.subr.bf16.mxu0 0
        %558 = vmatpush1.bf16.msra.mxu0 0
        %559 = vmatprep.subr.bf16.mxu0 0
        %560 = vmatpush1.bf16.msra.mxu0 0
        %561 = vmatprep.subr.bf16.mxu0 0
        %562 = vmatpush1.bf16.msra.mxu0 0
        %563 = vmatprep.subr.bf16.mxu0 0
        %564 = vmatpush1.bf16.msra.mxu0 0
        %565 = vmatprep.subr.bf16.mxu0 0
        %566 = vmatpush1.bf16.msra.mxu0 0
        %567 = vmatprep.subr.bf16.mxu0 0
        %568 = vmatpush1.bf16.msra.mxu0 0
        %569 = vmatprep.subr.bf16.mxu0 0
        %570 = vmatpush1.bf16.msra.mxu0 0
        %571 = vmatprep.subr.bf16.mxu0 0
        %572 = vmatpush1.bf16.msra.mxu0 0
        %573 = vmatprep.subr.bf16.mxu0 0
        %574 = vmatpush1.bf16.msra.mxu0 0
        %575 = vmatprep.subr.bf16.mxu0 0
        %576 = vmatpush1.bf16.msra.mxu0 0
        %577 = vmatprep.subr.bf16.mxu0 0
        %578 = vmatpush1.bf16.msra.mxu0 0
        %579 = vmatprep.subr.bf16.mxu0 0
        %580 = vmatpush1.bf16.msra.mxu0 0
        %581 = vmatprep.mubr.bf16.mxu0 0
        %582 = vmatmul.mubr.bf16.gmra.mrb[0].mxu0 %v547
        %v583 = vpop.f32.mrb[0].mxu0
        %v584 = vadd.f32 0.0, %v583
        %v585 = vpop.f32.mrb[0].mxu0
        %v586 = vpop.f32.mrb[0].mxu0
        %v587 = vpop.f32.mrb[0].mxu0
        %588 = vdwg.mxu0
        %v589 = vadd.f32 %v584, %v437
        %v590 = vmul.f32 %v353, %v517
        %v591 = vmul.f32 %v357, %v531
        %v592 = vadd.f32 %v590, %v591
        %v593 = vmul.f32 %v592, 1.8
        %v594 = vadd.f32 %v593, 0.01
        %v595 = vmul.f32 %v527, %v349
        %597 = vrot.lane.b32.xlu0 %v589, 96
        %v598 = vpop.permute.xlu0 %597
        %v600 = vadd.f32 %v595, %v598
        %v601 = vmul.f32 %v594, %v531
        %v602 = vsub.f32 %v600, %v601
        %v603 = vsub.f32 %v602, %v594
        %vm604 = vcmp.gt.f32.partialorder %v603, 0.0
        %v605 = vsel %vm604, 1, 0
        %v606 = vcvt.s32.f32 %v605
        %s607 = scalar_lea.vmem %s314, 4
        %608 = vst.msk [vmem:[%s607] sm:$0x3] %vm457, %v602
        %v609 = vmul.f32 %v540, %v343
        %s610 = scalar_lea.vmem %s274, 6 [#allocation8]
        %v611 = vld [vmem:[%s610] sm:$0x3]
        %v612 = vadd.f32 %v609, %v611
        %v613 = vadd.f32 %v612, %v584
        %v614 = vmul.f32 %v544, 0.01
        %v615 = vsub.f32 %v613, %v614
        %v616 = vsub.f32 %v615, 0.01
        %vm617 = vcmp.gt.f32.partialorder %v616, 0.0
        %v618 = vsel %vm617, 1, 0
        %v619 = vcvt.s32.f32 %v618
        %v620 = vpack.c.bf16 %v619, %v619
        %v622 = vsel %vm391, %v620, 0
        %624 = vmatprep.subr.bf16.mxu0 0
        %625 = vmatpush1.bf16.msra.mxu0 %v387
        %626 = vmatprep.subr.bf16.mxu0 0
        %627 = vmatpush1.bf16.msra.mxu0 %v388
        %628 = vmatprep.subr.bf16.mxu0 0
        %629 = vmatpush1.bf16.msra.mxu0 0
        %630 = vmatprep.subr.bf16.mxu0 0
        %631 = vmatpush1.bf16.msra.mxu0 0
        %632 = vmatprep.subr.bf16.mxu0 0
        %633 = vmatpush1.bf16.msra.mxu0 0
        %634 = vmatprep.subr.bf16.mxu0 0
        %635 = vmatpush1.bf16.msra.mxu0 0
        %636 = vmatprep.subr.bf16.mxu0 0
        %637 = vmatpush1.bf16.msra.mxu0 0
        %638 = vmatprep.subr.bf16.mxu0 0
        %639 = vmatpush1.bf16.msra.mxu0 0
        %640 = vmatprep.subr.bf16.mxu0 0
        %641 = vmatpush1.bf16.msra.mxu0 0
        %642 = vmatprep.subr.bf16.mxu0 0
        %643 = vmatpush1.bf16.msra.mxu0 0
        %644 = vmatprep.subr.bf16.mxu0 0
        %645 = vmatpush1.bf16.msra.mxu0 0
        %646 = vmatprep.subr.bf16.mxu0 0
        %647 = vmatpush1.bf16.msra.mxu0 0
        %648 = vmatprep.subr.bf16.mxu0 0
        %649 = vmatpush1.bf16.msra.mxu0 0
        %650 = vmatprep.subr.bf16.mxu0 0
        %651 = vmatpush1.bf16.msra.mxu0 0
        %652 = vmatprep.subr.bf16.mxu0 0
        %653 = vmatpush1.bf16.msra.mxu0 0
        %654 = vmatprep.subr.bf16.mxu0 0
        %655 = vmatpush1.bf16.msra.mxu0 0
        %656 = vmatprep.mubr.bf16.mxu0 0
        %657 = vmatmul.mubr.bf16.gmra.mrb[0].mxu0 %v622
        %v658 = vpop.f32.mrb[0].mxu0
        %v659 = vadd.f32 0.0, %v658
        %v660 = vpop.f32.mrb[0].mxu0
        %v661 = vpop.f32.mrb[0].mxu0
        %v662 = vpop.f32.mrb[0].mxu0
        %663 = vdwg.mxu0
        %v664 = vadd.f32 %v659, %v437
        %v665 = vmul.f32 %v353, %v592
        %v666 = vmul.f32 %v357, %v606
        %v667 = vadd.f32 %v665, %v666
        %v668 = vmul.f32 %v667, 1.8
        %v669 = vadd.f32 %v668, 0.01
        %v670 = vmul.f32 %v602, %v349
        %672 = vrot.lane.b32.xlu0 %v664, 96
        %v673 = vpop.permute.xlu0 %672
        %v675 = vadd.f32 %v670, %v673
        %v676 = vmul.f32 %v669, %v606
        %v677 = vsub.f32 %v675, %v676
        %v678 = vsub.f32 %v677, %v669
        %vm679 = vcmp.gt.f32.partialorder %v678, 0.0
        %v680 = vsel %vm679, 1, 0
        %v681 = vcvt.s32.f32 %v680
        %s682 = scalar_lea.vmem %s314, 6
        %683 = vst.msk [vmem:[%s682] sm:$0x3] %vm457, %v677
        %v684 = vmul.f32 %v615, %v343
        %s685 = scalar_lea.vmem %s274, 8 [#allocation8]
        %v686 = vld [vmem:[%s685] sm:$0x3]
        %v687 = vadd.f32 %v684, %v686
        %v688 = vadd.f32 %v687, %v659
        %v689 = vmul.f32 %v619, 0.01
        %v690 = vsub.f32 %v688, %v689
        %v691 = vsub.f32 %v690, 0.01
        %vm692 = vcmp.gt.f32.partialorder %v691, 0.0
        %v693 = vsel %vm692, 1, 0
        %v694 = vcvt.s32.f32 %v693
        %v695 = vpack.c.bf16 %v694, %v694
        %v697 = vsel %vm391, %v695, 0
        %699 = vmatprep.subr.bf16.mxu0 0
        %700 = vmatpush1.bf16.msra.mxu0 %v387
        %701 = vmatprep.subr.bf16.mxu0 0
        %702 = vmatpush1.bf16.msra.mxu0 %v388
        %703 = vmatprep.subr.bf16.mxu0 0
        %704 = vmatpush1.bf16.msra.mxu0 0
        %705 = vmatprep.subr.bf16.mxu0 0
        %706 = vmatpush1.bf16.msra.mxu0 0
        %707 = vmatprep.subr.bf16.mxu0 0
        %708 = vmatpush1.bf16.msra.mxu0 0
        %709 = vmatprep.subr.bf16.mxu0 0
        %710 = vmatpush1.bf16.msra.mxu0 0
        %711 = vmatprep.subr.bf16.mxu0 0
        %712 = vmatpush1.bf16.msra.mxu0 0
        %713 = vmatprep.subr.bf16.mxu0 0
        %714 = vmatpush1.bf16.msra.mxu0 0
        %715 = vmatprep.subr.bf16.mxu0 0
        %716 = vmatpush1.bf16.msra.mxu0 0
        %717 = vmatprep.subr.bf16.mxu0 0
        %718 = vmatpush1.bf16.msra.mxu0 0
        %719 = vmatprep.subr.bf16.mxu0 0
        %720 = vmatpush1.bf16.msra.mxu0 0
        %721 = vmatprep.subr.bf16.mxu0 0
        %722 = vmatpush1.bf16.msra.mxu0 0
        %723 = vmatprep.subr.bf16.mxu0 0
        %724 = vmatpush1.bf16.msra.mxu0 0
        %725 = vmatprep.subr.bf16.mxu0 0
        %726 = vmatpush1.bf16.msra.mxu0 0
        %727 = vmatprep.subr.bf16.mxu0 0
        %728 = vmatpush1.bf16.msra.mxu0 0
        %729 = vmatprep.subr.bf16.mxu0 0
        %730 = vmatpush1.bf16.msra.mxu0 0
        %731 = vmatprep.mubr.bf16.mxu0 0
        %732 = vmatmul.mubr.bf16.gmra.mrb[0].mxu0 %v697
        %v733 = vpop.f32.mrb[0].mxu0
        %v734 = vadd.f32 0.0, %v733
        %v735 = vpop.f32.mrb[0].mxu0
        %v736 = vpop.f32.mrb[0].mxu0
        %v737 = vpop.f32.mrb[0].mxu0
        %738 = vdwg.mxu0
        %v739 = vadd.f32 %v734, %v437
        %v740 = vmul.f32 %v353, %v667
        %v741 = vmul.f32 %v357, %v681
        %v742 = vadd.f32 %v740, %v741
        %v743 = vmul.f32 %v742, 1.8
        %v744 = vadd.f32 %v743, 0.01
        %v745 = vmul.f32 %v677, %v349
        %747 = vrot.lane.b32.xlu0 %v739, 96
        %v748 = vpop.permute.xlu0 %747
        %v750 = vadd.f32 %v745, %v748
        %v751 = vmul.f32 %v744, %v681
        %v752 = vsub.f32 %v750, %v751
        %v753 = vsub.f32 %v752, %v744
        %vm754 = vcmp.gt.f32.partialorder %v753, 0.0
        %v755 = vsel %vm754, 1, 0
        %v756 = vcvt.s32.f32 %v755
        %s757 = scalar_lea.vmem %s314, 8
        %758 = vst.msk [vmem:[%s757] sm:$0x3] %vm457, %v752
        %v759 = vmul.f32 %v690, %v343
        %s760 = scalar_lea.vmem %s274, 10 [#allocation8]
        %v761 = vld [vmem:[%s760] sm:$0x3]
        %v762 = vadd.f32 %v759, %v761
        %v763 = vadd.f32 %v762, %v734
        %v764 = vmul.f32 %v694, 0.01
        %v765 = vsub.f32 %v763, %v764
        %v766 = vsub.f32 %v765, 0.01
        %vm767 = vcmp.gt.f32.partialorder %v766, 0.0
        %v768 = vsel %vm767, 1, 0
        %v769 = vcvt.s32.f32 %v768
        %v770 = vpack.c.bf16 %v769, %v769
        %v772 = vsel %vm391, %v770, 0
        %774 = vmatprep.subr.bf16.mxu0 0
        %775 = vmatpush1.bf16.msra.mxu0 %v387
        %776 = vmatprep.subr.bf16.mxu0 0
        %777 = vmatpush1.bf16.msra.mxu0 %v388
        %778 = vmatprep.subr.bf16.mxu0 0
        %779 = vmatpush1.bf16.msra.mxu0 0
        %780 = vmatprep.subr.bf16.mxu0 0
        %781 = vmatpush1.bf16.msra.mxu0 0
        %782 = vmatprep.subr.bf16.mxu0 0
        %783 = vmatpush1.bf16.msra.mxu0 0
        %784 = vmatprep.subr.bf16.mxu0 0
        %785 = vmatpush1.bf16.msra.mxu0 0
        %786 = vmatprep.subr.bf16.mxu0 0
        %787 = vmatpush1.bf16.msra.mxu0 0
        %788 = vmatprep.subr.bf16.mxu0 0
        %789 = vmatpush1.bf16.msra.mxu0 0
        %790 = vmatprep.subr.bf16.mxu0 0
        %791 = vmatpush1.bf16.msra.mxu0 0
        %792 = vmatprep.subr.bf16.mxu0 0
        %793 = vmatpush1.bf16.msra.mxu0 0
        %794 = vmatprep.subr.bf16.mxu0 0
        %795 = vmatpush1.bf16.msra.mxu0 0
        %796 = vmatprep.subr.bf16.mxu0 0
        %797 = vmatpush1.bf16.msra.mxu0 0
        %798 = vmatprep.subr.bf16.mxu0 0
        %799 = vmatpush1.bf16.msra.mxu0 0
        %800 = vmatprep.subr.bf16.mxu0 0
        %801 = vmatpush1.bf16.msra.mxu0 0
        %802 = vmatprep.subr.bf16.mxu0 0
        %803 = vmatpush1.bf16.msra.mxu0 0
        %804 = vmatprep.subr.bf16.mxu0 0
        %805 = vmatpush1.bf16.msra.mxu0 0
        %806 = vmatprep.mubr.bf16.mxu0 0
        %807 = vmatmul.mubr.bf16.gmra.mrb[0].mxu0 %v772
        %v808 = vpop.f32.mrb[0].mxu0
        %v809 = vadd.f32 0.0, %v808
        %v810 = vpop.f32.mrb[0].mxu0
        %v811 = vpop.f32.mrb[0].mxu0
        %v812 = vpop.f32.mrb[0].mxu0
        %813 = vdwg.mxu0
        %v814 = vadd.f32 %v809, %v437
        %v815 = vmul.f32 %v353, %v742
        %v816 = vmul.f32 %v357, %v756
        %v817 = vadd.f32 %v815, %v816
        %v818 = vmul.f32 %v817, 1.8
        %v819 = vadd.f32 %v818, 0.01
        %v820 = vmul.f32 %v752, %v349
        %822 = vrot.lane.b32.xlu0 %v814, 96
        %v823 = vpop.permute.xlu0 %822
        %v825 = vadd.f32 %v820, %v823
        %v826 = vmul.f32 %v819, %v756
        %v827 = vsub.f32 %v825, %v826
        %v828 = vsub.f32 %v827, %v819
        %vm829 = vcmp.gt.f32.partialorder %v828, 0.0
        %v830 = vsel %vm829, 1, 0
        %v831 = vcvt.s32.f32 %v830
        %s832 = scalar_lea.vmem %s314, 10
        %833 = vst.msk [vmem:[%s832] sm:$0x3] %vm457, %v827
        %v834 = vmul.f32 %v765, %v343
        %s835 = scalar_lea.vmem %s274, 12 [#allocation8]
        %v836 = vld [vmem:[%s835] sm:$0x3]
        %v837 = vadd.f32 %v834, %v836
        %v838 = vadd.f32 %v837, %v809
        %v839 = vmul.f32 %v769, 0.01
        %v840 = vsub.f32 %v838, %v839
        %v841 = vsub.f32 %v840, 0.01
        %vm842 = vcmp.gt.f32.partialorder %v841, 0.0
        %v843 = vsel %vm842, 1, 0
        %v844 = vcvt.s32.f32 %v843
        %v845 = vpack.c.bf16 %v844, %v844
        %v847 = vsel %vm391, %v845, 0
        %849 = vmatprep.subr.bf16.mxu0 0
        %850 = vmatpush1.bf16.msra.mxu0 %v387
        %851 = vmatprep.subr.bf16.mxu0 0
        %852 = vmatpush1.bf16.msra.mxu0 %v388
        %853 = vmatprep.subr.bf16.mxu0 0
        %854 = vmatpush1.bf16.msra.mxu0 0
        %855 = vmatprep.subr.bf16.mxu0 0
        %856 = vmatpush1.bf16.msra.mxu0 0
        %857 = vmatprep.subr.bf16.mxu0 0
        %858 = vmatpush1.bf16.msra.mxu0 0
        %859 = vmatprep.subr.bf16.mxu0 0
        %860 = vmatpush1.bf16.msra.mxu0 0
        %861 = vmatprep.subr.bf16.mxu0 0
        %862 = vmatpush1.bf16.msra.mxu0 0
        %863 = vmatprep.subr.bf16.mxu0 0
        %864 = vmatpush1.bf16.msra.mxu0 0
        %865 = vmatprep.subr.bf16.mxu0 0
        %866 = vmatpush1.bf16.msra.mxu0 0
        %867 = vmatprep.subr.bf16.mxu0 0
        %868 = vmatpush1.bf16.msra.mxu0 0
        %869 = vmatprep.subr.bf16.mxu0 0
        %870 = vmatpush1.bf16.msra.mxu0 0
        %871 = vmatprep.subr.bf16.mxu0 0
        %872 = vmatpush1.bf16.msra.mxu0 0
        %873 = vmatprep.subr.bf16.mxu0 0
        %874 = vmatpush1.bf16.msra.mxu0 0
        %875 = vmatprep.subr.bf16.mxu0 0
        %876 = vmatpush1.bf16.msra.mxu0 0
        %877 = vmatprep.subr.bf16.mxu0 0
        %878 = vmatpush1.bf16.msra.mxu0 0
        %879 = vmatprep.subr.bf16.mxu0 0
        %880 = vmatpush1.bf16.msra.mxu0 0
        %881 = vmatprep.mubr.bf16.mxu0 0
        %882 = vmatmul.mubr.bf16.gmra.mrb[0].mxu0 %v847
        %v883 = vpop.f32.mrb[0].mxu0
        %v884 = vadd.f32 0.0, %v883
        %v885 = vpop.f32.mrb[0].mxu0
        %v886 = vpop.f32.mrb[0].mxu0
        %v887 = vpop.f32.mrb[0].mxu0
        %888 = vdwg.mxu0
        %v889 = vadd.f32 %v884, %v437
        %v890 = vmul.f32 %v353, %v817
        %v891 = vmul.f32 %v357, %v831
        %v892 = vadd.f32 %v890, %v891
        %v893 = vmul.f32 %v892, 1.8
        %v894 = vadd.f32 %v893, 0.01
        %v895 = vmul.f32 %v827, %v349
        %897 = vrot.lane.b32.xlu0 %v889, 96
        %v898 = vpop.permute.xlu0 %897
        %v900 = vadd.f32 %v895, %v898
        %v901 = vmul.f32 %v894, %v831
        %v902 = vsub.f32 %v900, %v901
        %v903 = vsub.f32 %v902, %v894
        %vm904 = vcmp.gt.f32.partialorder %v903, 0.0
        %v905 = vsel %vm904, 1, 0
        %v906 = vcvt.s32.f32 %v905
        %s907 = scalar_lea.vmem %s314, 12
        %908 = vst.msk [vmem:[%s907] sm:$0x3] %vm457, %v902
        %v909 = vmul.f32 %v840, %v343
        %s910 = scalar_lea.vmem %s274, 14 [#allocation8]
        %v911 = vld [vmem:[%s910] sm:$0x3]
        %v912 = vadd.f32 %v909, %v911
        %v913 = vadd.f32 %v912, %v884
        %v914 = vmul.f32 %v844, 0.01
        %v915 = vsub.f32 %v913, %v914
        %v916 = vsub.f32 %v915, 0.01
        %vm917 = vcmp.gt.f32.partialorder %v916, 0.0
        %v918 = vsel %vm917, 1, 0
        %v919 = vcvt.s32.f32 %v918
        %v920 = vpack.c.bf16 %v919, %v919
        %v922 = vsel %vm391, %v920, 0
        %924 = vmatprep.subr.bf16.mxu0 0
        %925 = vmatpush1.bf16.msra.mxu0 %v387
        %926 = vmatprep.subr.bf16.mxu0 0
        %927 = vmatpush1.bf16.msra.mxu0 %v388
        %928 = vmatprep.subr.bf16.mxu0 0
        %929 = vmatpush1.bf16.msra.mxu0 0
        %930 = vmatprep.subr.bf16.mxu0 0
        %931 = vmatpush1.bf16.msra.mxu0 0
        %932 = vmatprep.subr.bf16.mxu0 0
        %933 = vmatpush1.bf16.msra.mxu0 0
        %934 = vmatprep.subr.bf16.mxu0 0
        %935 = vmatpush1.bf16.msra.mxu0 0
        %936 = vmatprep.subr.bf16.mxu0 0
        %937 = vmatpush1.bf16.msra.mxu0 0
        %938 = vmatprep.subr.bf16.mxu0 0
        %939 = vmatpush1.bf16.msra.mxu0 0
        %940 = vmatprep.subr.bf16.mxu0 0
        %941 = vmatpush1.bf16.msra.mxu0 0
        %942 = vmatprep.subr.bf16.mxu0 0
        %943 = vmatpush1.bf16.msra.mxu0 0
        %944 = vmatprep.subr.bf16.mxu0 0
        %945 = vmatpush1.bf16.msra.mxu0 0
        %946 = vmatprep.subr.bf16.mxu0 0
        %947 = vmatpush1.bf16.msra.mxu0 0
        %948 = vmatprep.subr.bf16.mxu0 0
        %949 = vmatpush1.bf16.msra.mxu0 0
        %950 = vmatprep.subr.bf16.mxu0 0
        %951 = vmatpush1.bf16.msra.mxu0 0
        %952 = vmatprep.subr.bf16.mxu0 0
        %953 = vmatpush1.bf16.msra.mxu0 0
        %954 = vmatprep.subr.bf16.mxu0 0
        %955 = vmatpush1.bf16.msra.mxu0 0
        %956 = vmatprep.mubr.bf16.mxu0 0
        %957 = vmatmul.mubr.bf16.gmra.mrb[0].mxu0 %v922
        %v958 = vpop.f32.mrb[0].mxu0
        %v959 = vadd.f32 0.0, %v958
        %v960 = vpop.f32.mrb[0].mxu0
        %v961 = vpop.f32.mrb[0].mxu0
        %v962 = vpop.f32.mrb[0].mxu0
        %963 = vdwg.mxu0
        %v964 = vadd.f32 %v959, %v437
        %v965 = vmul.f32 %v353, %v892
        %v966 = vmul.f32 %v357, %v906
        %v967 = vadd.f32 %v965, %v966
        %v968 = vmul.f32 %v967, 1.8
        %v969 = vadd.f32 %v968, 0.01
        %v970 = vmul.f32 %v902, %v349
        %972 = vrot.lane.b32.xlu0 %v964, 96
        %v973 = vpop.permute.xlu0 %972
        %v975 = vadd.f32 %v970, %v973
        %v976 = vmul.f32 %v969, %v906
        %v977 = vsub.f32 %v975, %v976
        %v978 = vsub.f32 %v977, %v969
        %vm979 = vcmp.gt.f32.partialorder %v978, 0.0
        %v980 = vsel %vm979, 1, 0
        %v981 = vcvt.s32.f32 %v980
        %s982 = scalar_lea.vmem %s314, 14
        %983 = vst.msk [vmem:[%s982] sm:$0x3] %vm457, %v977
        %vm984 = vcmask 254976
        %985 = vst.msk [vmem:[#allocation2] sm:$0x3] %vm984, %v915
        %986 = vst.msk [vmem:[#allocation3] sm:$0x3] %vm984, %v919
        %987 = vst.msk [vmem:[#allocation4] sm:$0x3] %vm984, %v959
        %988 = vst.msk [vmem:[#allocation5] sm:$0x3] %vm457, %v977
        %989 = vst.msk [vmem:[#allocation6] sm:$0x3] %vm457, %v981
        %990 = vst.msk [vmem:[#allocation7] sm:$0x3] %vm457, %v967
        %v991 = vld [vmem:[%s314] sm:$0x3]
        %v992 = vld [vmem:[%s314 + $0x2] sm:$0x3]
        %v993 = vld [vmem:[%s314 + $0x4] sm:$0x3]
        %v994 = vld [vmem:[%s314 + $0x6] sm:$0x3]
        %v995 = vld [vmem:[%s314 + $0x8] sm:$0x3]
        %v996 = vld [vmem:[%s314 + $0xa] sm:$0x3]
        %v997 = vld [vmem:[%s314 + $0xc] sm:$0x3]
        %v998 = vld [vmem:[%s314 + $0xe] sm:$0x3]
        %v999 = vsel %vm457, %v991, -inf
        %1000 = vmax.xlane.f32.xlu0 %v999
        %v1001 = vpop.xlane.xlu0 %1000
        %v1002 = vsel %vm457, %v992, -inf
        %1003 = vmax.xlane.f32.xlu0 %v1002
        %v1004 = vpop.xlane.xlu0 %1003
        %v1005 = vsel %vm457, %v993, -inf
        %1006 = vmax.xlane.f32.xlu0 %v1005
        %v1007 = vpop.xlane.xlu0 %1006
        %v1008 = vsel %vm457, %v994, -inf
        %1009 = vmax.xlane.f32.xlu0 %v1008
        %v1010 = vpop.xlane.xlu0 %1009
        %v1011 = vsel %vm457, %v995, -inf
        %1012 = vmax.xlane.f32.xlu0 %v1011
        %v1013 = vpop.xlane.xlu0 %1012
        %v1014 = vsel %vm457, %v996, -inf
        %1015 = vmax.xlane.f32.xlu0 %v1014
        %v1016 = vpop.xlane.xlu0 %1015
        %v1017 = vsel %vm457, %v997, -inf
        %1018 = vmax.xlane.f32.xlu0 %v1017
        %v1019 = vpop.xlane.xlu0 %1018
        %v1020 = vsel %vm457, %v998, -inf
        %1021 = vmax.xlane.f32.xlu0 %v1020
        %v1022 = vpop.xlane.xlu0 %1021
        %v1023 = vsub.f32 %v991, %v1001
        %v1024 = vsub.f32 %v992, %v1004
        %v1025 = vsub.f32 %v993, %v1007
        %v1026 = vsub.f32 %v994, %v1010
        %v1027 = vsub.f32 %v995, %v1013
        %v1028 = vsub.f32 %v996, %v1016
        %v1029 = vsub.f32 %v997, %v1019
        %v1030 = vsub.f32 %v998, %v1022
        %v1031 = vmul.f32 %v1023, 1.442695
        %v1032 = vpow.pop %v1031
        %v1033 = vmul.f32 %v1024, 1.442695
        %v1034 = vpow.pop %v1033
        %v1035 = vmul.f32 %v1025, 1.442695
        %v1036 = vpow.pop %v1035
        %v1037 = vmul.f32 %v1026, 1.442695
        %v1038 = vpow.pop %v1037
        %v1039 = vmul.f32 %v1027, 1.442695
        %v1040 = vpow.pop %v1039
        %v1041 = vmul.f32 %v1028, 1.442695
        %v1042 = vpow.pop %v1041
        %v1043 = vmul.f32 %v1029, 1.442695
        %v1044 = vpow.pop %v1043
        %v1045 = vmul.f32 %v1030, 1.442695
        %v1046 = vpow.pop %v1045
        %v1047 = vsel %vm457, %v1032, 0.0
        %1048 = vadd.xlane.f32.xlu0 %v1047
        %v1049 = vpop.xlane.xlu0 %1048
        %v1050 = vsel %vm457, %v1034, 0.0
        %1051 = vadd.xlane.f32.xlu0 %v1050
        %v1052 = vpop.xlane.xlu0 %1051
        %v1053 = vsel %vm457, %v1036, 0.0
        %1054 = vadd.xlane.f32.xlu0 %v1053
        %v1055 = vpop.xlane.xlu0 %1054
        %v1056 = vsel %vm457, %v1038, 0.0
        %1057 = vadd.xlane.f32.xlu0 %v1056
        %v1058 = vpop.xlane.xlu0 %1057
        %v1059 = vsel %vm457, %v1040, 0.0
        %1060 = vadd.xlane.f32.xlu0 %v1059
        %v1061 = vpop.xlane.xlu0 %1060
        %v1062 = vsel %vm457, %v1042, 0.0
        %1063 = vadd.xlane.f32.xlu0 %v1062
        %v1064 = vpop.xlane.xlu0 %1063
        %v1065 = vsel %vm457, %v1044, 0.0
        %1066 = vadd.xlane.f32.xlu0 %v1065
        %v1067 = vpop.xlane.xlu0 %1066
        %v1068 = vsel %vm457, %v1046, 0.0
        %1069 = vadd.xlane.f32.xlu0 %v1068
        %v1070 = vpop.xlane.xlu0 %1069
        %v1071 = vlog2.pop %v1049
        %v1072 = vmul.f32 %v1071, 0.6931472
        %v1073 = vlog2.pop %v1052
        %v1074 = vmul.f32 %v1073, 0.6931472
        %v1075 = vlog2.pop %v1055
        %v1076 = vmul.f32 %v1075, 0.6931472
        %v1077 = vlog2.pop %v1058
        %v1078 = vmul.f32 %v1077, 0.6931472
        %v1079 = vlog2.pop %v1061
        %v1080 = vmul.f32 %v1079, 0.6931472
        %v1081 = vlog2.pop %v1064
        %v1082 = vmul.f32 %v1081, 0.6931472
        %v1083 = vlog2.pop %v1067
        %v1084 = vmul.f32 %v1083, 0.6931472
        %v1085 = vlog2.pop %v1070
        %v1086 = vmul.f32 %v1085, 0.6931472
        %v1087 = vadd.f32 %v1001, %v1072
        %v1088 = vadd.f32 %v1004, %v1074
        %v1089 = vadd.f32 %v1007, %v1076
        %v1090 = vadd.f32 %v1010, %v1078
        %v1091 = vadd.f32 %v1013, %v1080
        %v1092 = vadd.f32 %v1016, %v1082
        %v1093 = vadd.f32 %v1019, %v1084
        %v1094 = vadd.f32 %v1022, %v1086
        %v1095 = vsub.f32 %v991, %v1087
        %v1096 = vsub.f32 %v992, %v1088
        %v1097 = vsub.f32 %v993, %v1089
        %v1098 = vsub.f32 %v994, %v1090
        %v1099 = vsub.f32 %v995, %v1091
        %v1100 = vsub.f32 %v996, %v1092
        %v1101 = vsub.f32 %v997, %v1093
        %v1102 = vsub.f32 %v998, %v1094
        %1103 = vst.msk [vmem:[%s314] sm:$0x3] %vm457, %v1095
        %1104 = vst.msk [vmem:[%s314 + $0x2] sm:$0x3] %vm457, %v1096
        %1105 = vst.msk [vmem:[%s314 + $0x4] sm:$0x3] %vm457, %v1097
        %1106 = vst.msk [vmem:[%s314 + $0x6] sm:$0x3] %vm457, %v1098
        %1107 = vst.msk [vmem:[%s314 + $0x8] sm:$0x3] %vm457, %v1099
        %1108 = vst.msk [vmem:[%s314 + $0xa] sm:$0x3] %vm457, %v1100
        %1109 = vst.msk [vmem:[%s314 + $0xc] sm:$0x3] %vm457, %v1101
        %1110 = vst.msk [vmem:[%s314 + $0xe] sm:$0x3] %vm457, %v1102
        %s1111 = smul.u32 8, %s22
        %p1112 = scmp.lt.s32.totalorder %s1111, 15
        %s1113 = scalar_select %p1112, %s1111, 15
        %s1114 = smul.addr %s1113, 2
        %s1115 = scalar_lea.vmem %s7, %s1114
        // Predicated region
        $region61: #{tpu_custom_call.1} parent=47 // pred_check
          %p1116 = pneg %p192
        $region62: #{tpu_custom_call.1} parent=47 // pred_check_branch
          %1118 = sbr.rel (%p1116) target = $region64
        $region63: #{tpu_custom_call.1} parent=47 // pred_region
          %s1119 = smul.u32 8, %s22
        $region64: #{tpu_custom_call.1} parent=47 // pred_fallthru
          _
      $region48: #{tpu_custom_call.1} parent=5 // pred_fallthru
        _
      %p1120 = scmp.le.s32.totalorder 2, %s17
      // Predicated region
      $region65: #{tpu_custom_call.1} parent=5 // pred_check
        %p1121 = pneg %p1120
      $region66: #{tpu_custom_call.1} parent=5 // pred_check_branch
        %1123 = sbr.rel (%p1121) target = $region68
      $region67: #{tpu_custom_call.1} parent=5 // pred_region
        %s1124 = ssub.s32 %s17, 2
        // Predicated region
        $region69: #{tpu_custom_call.1} parent=67 // pred_check
          %p1125 = pneg %p198
        $region70: #{tpu_custom_call.1} parent=67 // pred_check_branch
          %1127 = sbr.rel (%p1125) target = $region72
        $region71: #{tpu_custom_call.1} parent=67 // pred_region
          %s1128 = smul.u32 8, %s23
          %p1129 = scmp.lt.s32.totalorder %s1128, 15
          %s1130 = scalar_select %p1129, %s1128, 15
          %s1131 = smul.addr %s1130, 2
          %s1132 = scalar_lea.vmem %s7, %s1131
        $region72: #{tpu_custom_call.1} parent=67 // pred_fallthru
          _
      $region68: #{tpu_custom_call.1} parent=5 // pred_fallthru
        _
    $region6: #{tpu_custom_call.1} parent=1 // loop_footer
      %s21 = sadd.s32 1, %s17
    $region7: #{tpu_custom_call.1} parent=1 // loop_footer_branch
      %16 = sbr.rel target = $region3
    $region8: #{tpu_custom_call.1} parent=1 // loop_exit
      _
    %1133 = vsyncpa [#allocation9], 1
    %s1134 = scalar_lea.sflag [#allocation9], 1
    %1135 = vsyncpa %s1134, 1
    %1136 = vsyncpa [#allocation11], 1

</llo_original>
